<compile_context>
chip_gen: v6e
topology: v6e:2x2x1
jax: 0.10.0
libtpu: 0.0.40
codegen_flags: <defaults>
</compile_context>

<pallas_src>
from functools import partial, lru_cache

import numpy as np
import jax
import jax.numpy as jnp
from jax.experimental import pallas as pl
from jax.experimental.pallas import tpu as pltpu


# ----------------------------------------------------------------------------
# Utilities
# ----------------------------------------------------------------------------
@lru_cache(maxsize=None)
def _vmem_limit_bytes():
    """~3/4 of per-core VMEM capacity (v5e/v6e: 96 MiB, v7x: 48 MiB)."""
    try:
        info_fn = getattr(pltpu, "get_tpu_info", None)
        if info_fn is not None:
            cap = int(getattr(info_fn(), "vmem_capacity_bytes", 0) or 0)
            if cap > 0:
                return max(32 * 1024 * 1024, (cap * 3) // 4)
    except Exception:
        pass
    return 48 * 1024 * 1024


def _mosaic_params(*semantics):
    return pltpu.CompilerParams(
        dimension_semantics=tuple(semantics),
        vmem_limit_bytes=_vmem_limit_bytes(),
    )


def _pick_tile_m(m, pref=1024):
    """Row-tile size for an [M, K] GEMM slab; avoid pad/slice when possible."""
    if m <= pref:
        return m, m
    for t in (pref, 512, 256, 128, 64, 32, 16, 8):
        if m % t == 0:
            return t, m
    mp = -(-m // pref) * pref
    return pref, mp


@lru_cache(maxsize=None)
def _col_mask(h, w):
    """[1, h*(w+2), 1] f32: 1 on real output columns, 0 on the two wrap-around
    junk columns of the row-flattened (pitch = w+2) layout."""
    wp = w + 2
    cols = np.arange(h * wp) % wp
    return jnp.asarray((cols < w).astype(np.float32)).reshape(1, h * wp, 1)


# ----------------------------------------------------------------------------
# Pallas kernels
# ----------------------------------------------------------------------------
def _conv3x3_s1_kernel(xf_ref, w_ref, mask_ref, y_ref, ps_ref, pss_ref, acc_ref,
                       *, h, wp):
    """Whole-image 3x3 / stride-1 conv on the row-flattened padded input.

    xf_ref  : [1, (h+3)*wp, Cin] bf16 zero-padded input, row pitch wp = w+2
    w_ref   : [3, 3, Cin, Cout]  bf16 (resident: constant index map)
    mask_ref: [1, h*wp, 1]       f32  valid-column mask
    y_ref   : [1, h*wp, Cout]    bf16 conv output in pitch layout (junk cols kept)
    ps/pss  : [1, 1, Cout]       f32  per-image masked sum / sum-of-squares
    acc_ref : [h*wp, Cout]       f32  VMEM accumulator scratch
    """
    m = h * wp
    # TODO(synk): fold the 3 dj taps into a single K=3*Cin matmul per filter row.
    for di in range(3):
        for dj in range(3):
            s = di * wp + dj
            prod = jnp.dot(xf_ref[0, s:s + m, :], w_ref[di, dj],
                           preferred_element_type=jnp.float32)
            if di == 0 and dj == 0:
                acc_ref[...] = prod
            else:
                acc_ref[...] += prod
    acc = acc_ref[...]
    y_ref[0] = acc.astype(y_ref.dtype)
    accm = acc * mask_ref[0]
    ps_ref[0] = jnp.sum(accm, axis=0, keepdims=True)
    pss_ref[0] = jnp.sum(accm * acc, axis=0, keepdims=True)


def _gemm_stats_kernel(x_ref, w_ref, y_ref, ps_ref, pss_ref):
    """One M-tile of an im2col GEMM with fused per-tile BN statistics."""
    acc = jnp.dot(x_ref[...], w_ref[...], preferred_element_type=jnp.float32)
    y_ref[...] = acc.astype(y_ref.dtype)
    ps_ref[0] = jnp.sum(acc, axis=0, keepdims=True)
    pss_ref[0] = jnp.sum(acc * acc, axis=0, keepdims=True)


def _bn_pad_kernel(y_ref, m_ref, s_ref, b_ref, o_ref, *, wp, relu):
    """Folded BN (+ReLU) -> zero-padded bf16 feature tensor (pitch layout)."""
    m = y_ref.shape[1]
    v = y_ref[0].astype(jnp.float32) * s_ref[...] + b_ref[...]
    if relu:
        v = jnp.maximum(v, 0.0)
    v = v * m_ref[0]                      # zero the wrap-around junk columns
    o_ref[...] = jnp.zeros_like(o_ref)    # halo rows/cols of the padded output
    o_ref[0, wp + 1:wp + 1 + m, :] = v.astype(o_ref.dtype)


def _bn_respad_kernel(y_ref, r_ref, m_ref, s_ref, b_ref, o_ref, *, wp):
    """Folded BN + identity residual (read from the padded input) + ReLU."""
    m = y_ref.shape[1]
    res = r_ref[0, wp + 1:wp + 1 + m, :].astype(jnp.float32)
    v = y_ref[0].astype(jnp.float32) * s_ref[...] + b_ref[...] + res
    v = jnp.maximum(v, 0.0) * m_ref[0]
    o_ref[...] = jnp.zeros_like(o_ref)
    o_ref[0, wp + 1:wp + 1 + m, :] = v.astype(o_ref.dtype)


def _bn_res2_kernel(y_ref, yd_ref, m_ref, s_ref, b_ref, sd_ref, bd_ref, o_ref,
                    *, wp):
    """Folded BN + (downsample conv output * its folded BN) residual + ReLU."""
    m = y_ref.shape[1]
    res = yd_ref[0].astype(jnp.float32) * sd_ref[...] + bd_ref[...]
    v = y_ref[0].astype(jnp.float32) * s_ref[...] + b_ref[...] + res
    v = jnp.maximum(v, 0.0) * m_ref[0]
    o_ref[...] = jnp.zeros_like(o_ref)
    o_ref[0, wp + 1:wp + 1 + m, :] = v.astype(o_ref.dtype)


def _avgpool_kernel(x_ref, o_ref, *, inv):
    # Padding/junk positions are zero, so summing the whole padded block is exact.
    o_ref[0] = jnp.sum(x_ref[0].astype(jnp.float32), axis=0, keepdims=True) * inv


def _matmul_bias_kernel(x_ref, w_ref, b_ref, o_ref):
    o_ref[...] = (jnp.dot(x_ref[...], w_ref[...],
                          preferred_element_type=jnp.float32) + b_ref[...])


# ----------------------------------------------------------------------------
# Conv wrappers
# ----------------------------------------------------------------------------
def conv3x3_s1(P, w3, h, w):
    """3x3/stride-1/pad-1 conv; P is the padded bf16 feature tensor, flat view
    [N, (h+3)*(w+2), Cin].  Returns (y in pitch layout, per-image ps, pss)."""
    n, lp, cin = P.shape
    wp = w + 2
    m = h * wp
    cout = w3.shape[-1]
    mask = _col_mask(h, w)
    y, ps, pss = pl.pallas_call(
        partial(_conv3x3_s1_kernel, h=h, wp=wp),
        grid=(n,),
        in_specs=[
            pl.BlockSpec((1, lp, cin), lambda i: (i, 0, 0)),
            # Constant index map => weights DMA'd once and stay resident.
            pl.BlockSpec((3, 3, cin, cout), lambda i: (0, 0, 0, 0)),
            pl.BlockSpec((1, m, 1), lambda i: (0, 0, 0)),
        ],
        out_specs=[
            pl.BlockSpec((1, m, cout), lambda i: (i, 0, 0)),
            pl.BlockSpec((1, 1, cout), lambda i: (i, 0, 0)),
            pl.BlockSpec((1, 1, cout), lambda i: (i, 0, 0)),
        ],
        out_shape=[
            jax.ShapeDtypeStruct((n, m, cout), jnp.bfloat16),
            jax.ShapeDtypeStruct((n, 1, cout), jnp.float32),
            jax.ShapeDtypeStruct((n, 1, cout), jnp.float32),
        ],
        scratch_shapes=[pltpu.VMEM((m, cout), jnp.float32)],
        compiler_params=_mosaic_params("parallel"),
    )(P, w3, mask)
    return y, ps, pss


def gemm_stats(x2d, w2d):
    """bf16 GEMM with fused per-tile BN statistics (stem / stride-2 / 1x1)."""
    m, k = x2d.shape
    cout = w2d.shape[-1]
    tm, mp = _pick_tile_m(m)
    if mp != m:
        x2d = jnp.pad(x2d, ((0, mp - m), (0, 0)))     # zero rows: stats-safe
    t = mp // tm
    y, ps, pss = pl.pallas_call(
        _gemm_stats_kernel,
        grid=(t,),
        in_specs=[pl.BlockSpec((tm, k), lambda i: (i, 0)),
                  pl.BlockSpec((k, cout), lambda i: (0, 0))],
        out_specs=[pl.BlockSpec((tm, cout), lambda i: (i, 0)),
                   pl.BlockSpec((1, 1, cout), lambda i: (i, 0, 0)),
                   pl.BlockSpec((1, 1, cout), lambda i: (i, 0, 0))],
        out_shape=[jax.ShapeDtypeStruct((mp, cout), jnp.bfloat16),
                   jax.ShapeDtypeStruct((t, 1, cout), jnp.float32),
                   jax.ShapeDtypeStruct((t, 1, cout), jnp.float32)],
        compiler_params=_mosaic_params("parallel"),
    )(x2d, w2d)
    if mp != m:
        y = y[:m]
    return y, ps, pss


def _im2col_prepadded(xp, k, stride, ho, wo):
    """Tap stack for a k x k / stride conv whose spatial pad is already in xp.
    TODO(synk): replace with an in-kernel streaming stride-2 conv."""
    n, _, _, c = xp.shape
    taps = []
    for i in range(k):
        for j in range(k):
            taps.append(xp[:, i:i + stride * (ho - 1) + 1:stride,
                           j:j + stride * (wo - 1) + 1:stride, :])
    p = jnp.stack(taps, axis=3)                        # [N, ho, wo, k*k, C]
    return p.reshape(n * ho * wo, k * k * c)


def _dense_to_pitch(y2d, n, ho, wo):
    """[n*ho*wo, C] -> [n, ho*(wo+2), C] with zeroed junk columns."""
    c = y2d.shape[-1]
    y4 = y2d.reshape(n, ho, wo, c)
    return jnp.pad(y4, ((0, 0), (0, 0), (0, 2), (0, 0))).reshape(n, ho * (wo + 2), c)


# ----------------------------------------------------------------------------
# BatchNorm (training-mode batch stats, folded to scale/shift) + residual + ReLU
# ----------------------------------------------------------------------------
def _bn_scale_shift(ps, pss, count, gamma, beta, eps=1e-5):
    c = ps.shape[-1]
    s = jnp.sum(ps.reshape(-1, c), axis=0)
    ss = jnp.sum(pss.reshape(-1, c), axis=0)
    mean = s / count
    var = ss / count - mean * mean        # biased, matches PyTorch normalization
    scale = gamma / jnp.sqrt(var + eps)
    shift = beta - mean * scale
    return (scale.reshape(1, c).astype(jnp.float32),
            shift.reshape(1, c).astype(jnp.float32))


def _padded_affine_call(kernel, in_specs, operands, n, h, w, c):
    lp = (h + 3) * (w + 2)
    return pl.pallas_call(
        kernel,
        grid=(n,),
        in_specs=in_specs,
        out_specs=pl.BlockSpec((1, lp, c), lambda i: (i, 0, 0)),
        out_shape=jax.ShapeDtypeStruct((n, lp, c), jnp.bfloat16),
        compiler_params=_mosaic_params("parallel"),
    )(*operands)


def bn_relu_pad(y, h, w, scale, shift, relu=True):
    n, m, c = y.shape
    mask = _col_mask(h, w)
    in_specs = [pl.BlockSpec((1, m, c), lambda i: (i, 0, 0)),
                pl.BlockSpec((1, m, 1), lambda i: (0, 0, 0)),
                pl.BlockSpec((1, c), lambda i: (0, 0)),
                pl.BlockSpec((1, c), lambda i: (0, 0))]
    return _padded_affine_call(partial(_bn_pad_kernel, wp=w + 2, relu=relu),
                               in_specs, (y, mask, scale, shift), n, h, w, c)


def bn_add_identity_relu_pad(y, identity_P, h, w, scale, shift):
    n, m, c = y.shape
    lp = identity_P.shape[1]
    mask = _col_mask(h, w)
    in_specs = [pl.BlockSpec((1, m, c), lambda i: (i, 0, 0)),
                pl.BlockSpec((1, lp, c), lambda i: (i, 0, 0)),
                pl.BlockSpec((1, m, 1), lambda i: (0, 0, 0)),
                pl.BlockSpec((1, c), lambda i: (0, 0)),
                pl.BlockSpec((1, c), lambda i: (0, 0))]
    return _padded_affine_call(partial(_bn_respad_kernel, wp=w + 2),
                               in_specs, (y, identity_P, mask, scale, shift),
                               n, h, w, c)


def bn_add_downsample_relu_pad(y, yd, h, w, scale, shift, scale_d, shift_d):
    n, m, c = y.shape
    mask = _col_mask(h, w)
    vec = pl.BlockSpec((1, c), lambda i: (0, 0))
    in_specs = [pl.BlockSpec((1, m, c), lambda i: (i, 0, 0)),
                pl.BlockSpec((1, m, c), lambda i: (i, 0, 0)),
                pl.BlockSpec((1, m, 1), lambda i: (0, 0, 0)),
                vec, vec, vec, vec]
    return _padded_affine_call(partial(_bn_res2_kernel, wp=w + 2),
                               in_specs,
                               (y, yd, mask, scale, shift, scale_d, shift_d),
                               n, h, w, c)


# ----------------------------------------------------------------------------
# Pooling / FC
# ----------------------------------------------------------------------------
def global_avgpool(P, h, w):
    """AdaptiveAvgPool2d((1,1)) + flatten on the padded bf16 tensor."""
    n, lp, c = P.shape
    out = pl.pallas_call(
        partial(_avgpool_kernel, inv=1.0 / float(h * w)),
        grid=(n,),
        in_specs=[pl.BlockSpec((1, lp, c), lambda i: (i, 0, 0))],
        out_specs=pl.BlockSpec((1, 1, c), lambda i: (i, 0, 0)),
        out_shape=jax.ShapeDtypeStruct((n, 1, c), jnp.float32),
        compiler_params=_mosaic_params("parallel"),
    )(P)
    return out.reshape(n, c)


def linear(x, w, b):
    """x: [N, Din], w: [Din, Dout], b: [Dout] -- tiny, single block."""
    return pl.pallas_call(
        _matmul_bias_kernel,
        out_shape=jax.ShapeDtypeStruct((x.shape[0], w.shape[1]), jnp.float32),
    )(x, w, b.reshape(1, -1))


# ----------------------------------------------------------------------------
# ResNet model (BasicBlock, expansion = 1)
# ----------------------------------------------------------------------------
def stem_forward(x_nhwc, params):
    """conv7x7/s2 + BN + ReLU + maxpool3x3/s2 -> padded bf16 layer1 input."""
    n, h, w, _ = x_nhwc.shape
    ho = (h + 6 - 7) // 2 + 1
    wo = (w + 6 - 7) // 2 + 1
    xp = jnp.pad(x_nhwc.astype(jnp.bfloat16), ((0, 0), (3, 3), (3, 3), (0, 0)))
    cols = _im2col_prepadded(xp, 7, 2, ho, wo)
    yd, ps, pss = gemm_stats(cols, params["conv1"].reshape(7 * 7 * 3, 64))
    s, b = _bn_scale_shift(ps, pss, n * ho * wo, params["bn1_g"], params["bn1_b"])
    y = _dense_to_pitch(yd, n, ho, wo)
    Pstem = bn_relu_pad(y, ho, wo, s, b, relu=True)
    P4 = Pstem.reshape(n, ho + 3, wo + 2, 64)
    # MaxPool2d(3, 2, 1): zero padding is exact here (post-ReLU input >= 0).
    # TODO(synk): fuse the pooling into the stem BN epilogue kernel.
    hp = (ho - 1) // 2 + 1
    wp_ = (wo - 1) // 2 + 1
    pooled = None
    for i in range(3):
        for j in range(3):
            tap = P4[:, i:i + 2 * (hp - 1) + 1:2, j:j + 2 * (wp_ - 1) + 1:2, :]
            pooled = tap if pooled is None else jnp.maximum(pooled, tap)
    Pl1 = jnp.pad(pooled, ((0, 0), (1, 2), (1, 1), (0, 0)))
    return Pl1.reshape(n, (hp + 3) * (wp_ + 2), 64), hp, wp_


def basic_block(P, h, w, p):
    """BasicBlock (expansion=1).  P: [N, (h+3)*(w+2), Cin] zero-padded bf16."""
    n, _, cin = P.shape
    stride = p["stride"]
    cout = p["w1"].shape[-1]
    if stride == 1:
        ho, wo = h, w
        y1, ps1, pss1 = conv3x3_s1(P, p["w1"], h, w)
    else:
        ho = (h - 1) // stride + 1
        wo = (w - 1) // stride + 1
        P4 = P.reshape(n, h + 3, w + 2, cin)
        cols = _im2col_prepadded(P4, 3, stride, ho, wo)
        y1d, ps1, pss1 = gemm_stats(cols, p["w1"].reshape(9 * cin, cout))
        y1 = _dense_to_pitch(y1d, n, ho, wo)
    count = n * ho * wo
    s1, b1 = _bn_scale_shift(ps1, pss1, count, p["g1"], p["b1"])
    P2 = bn_relu_pad(y1, ho, wo, s1, b1, relu=True)

    y2, ps2, pss2 = conv3x3_s1(P2, p["w2"], ho, wo)
    s2, b2 = _bn_scale_shift(ps2, pss2, count, p["g2"], p["b2"])

    if "down_w" in p:
        P4 = P.reshape(n, h + 3, w + 2, cin)
        xi = P4[:, 1:h + 1:stride, 1:w + 1:stride, :].reshape(n * ho * wo, cin)
        ydd, psd, pssd = gemm_stats(xi, p["down_w"].reshape(cin, cout))
        sd, bd = _bn_scale_shift(psd, pssd, count, p["down_g"], p["down_b"])
        yd = _dense_to_pitch(ydd, n, ho, wo)
        Pout = bn_add_downsample_relu_pad(y2, yd, ho, wo, s2, b2, sd, bd)
    else:
        # stride == 1 and Cin == Cout here, so the block input P is the identity.
        Pout = bn_add_identity_relu_pad(y2, P, ho, wo, s2, b2)
    return Pout, ho, wo


def resnet_forward(params, x_nchw):
    x = jnp.transpose(x_nchw, (0, 2, 3, 1))  # NCHW -> NHWC
    P, h, w = stem_forward(x, params)
    for layer in params["layers"]:
        for blk in layer:
            P, h, w = basic_block(P, h, w, blk)
    feats = global_avgpool(P, h, w)          # avgpool + flatten
    return linear(feats, params["fc_w"], params["fc_b"])


# ----------------------------------------------------------------------------
# Deterministic parameter initialization (kaiming-normal fan_out for convs)
# ----------------------------------------------------------------------------
def _kaiming(key, shape):
    kh, kw, _, cout = shape
    fan_out = kh * kw * cout
    w = (2.0 / fan_out) ** 0.5 * jax.random.normal(key, shape, jnp.float32)
    return w.astype(jnp.bfloat16)            # pre-cast once (review item)


def init_params(key, blocks_num=(1, 1, 1, 1), num_classes=10):
    keys = iter(jax.random.split(key, 256))
    p = {
        "conv1": _kaiming(next(keys), (7, 7, 3, 64)),
        "bn1_g": jnp.ones((64,), jnp.float32),
        "bn1_b": jnp.zeros((64,), jnp.float32),
    }
    in_c = 64
    layers = []
    for li, (ch, n) in enumerate(zip((64, 128, 256, 512), blocks_num)):
        first_stride = 1 if li == 0 else 2
        blocks = []
        for bi in range(n):
            s = first_stride if bi == 0 else 1
            blk = {"stride": s}
            blk["w1"] = _kaiming(next(keys), (3, 3, in_c, ch))
            blk["g1"] = jnp.ones((ch,), jnp.float32)
            blk["b1"] = jnp.zeros((ch,), jnp.float32)
            blk["w2"] = _kaiming(next(keys), (3, 3, ch, ch))
            blk["g2"] = jnp.ones((ch,), jnp.float32)
            blk["b2"] = jnp.zeros((ch,), jnp.float32)
            if s != 1 or in_c != ch:          # downsample path (1x1 conv + BN)
                blk["down_w"] = _kaiming(next(keys), (1, 1, in_c, ch))
                blk["down_g"] = jnp.ones((ch,), jnp.float32)
                blk["down_b"] = jnp.zeros((ch,), jnp.float32)
            in_c = ch
            blocks.append(blk)
        layers.append(blocks)
    p["layers"] = layers
    bound = 1.0 / (512.0 ** 0.5)
    p["fc_w"] = jax.random.uniform(next(keys), (512, num_classes), jnp.float32,
                                   -bound, bound)
    p["fc_b"] = jax.random.uniform(next(keys), (num_classes,), jnp.float32,
                                   -bound, bound)
    return p


if __name__ == "__main__":
    key = jax.random.PRNGKey(0)
    pkey, xkey = jax.random.split(key)
    params = init_params(pkey, blocks_num=(1, 1, 1, 1), num_classes=10)
    # Small input consistent with the module: NCHW, 3 input channels.
    x = jax.random.normal(xkey, (2, 3, 32, 32), jnp.float32)
    out = resnet_forward(params, x)
    out = jax.block_until_ready(out)
    assert out.shape == (2, 10)
    print("KERNEL_OK")
</pallas_src>

<mosaic_0001>
module attributes {stable_mosaic.version = 11 : i64} {
  func.func @_gemm_stats_kernel(%arg0: i32, %arg1: memref<512x147xbf16, #tpu.memory_space<vmem>>, %arg2: memref<147x64xbf16, #tpu.memory_space<vmem>>, %arg3: memref<512x64xbf16, #tpu.memory_space<vmem>>, %arg4: memref<1x1x64xf32, #tpu.memory_space<vmem>>, %arg5: memref<1x1x64xf32, #tpu.memory_space<vmem>>) attributes {dimension_semantics = [#tpu.dimension_semantics<parallel>], iteration_bounds = array<i64: 1>, scalar_prefetch = 0 : i64, scratch_operands = 0 : i64, tpu.core_type = #tpu.core_type<tc>, window_params = [{transform_indices = @transform_0, window_bounds = array<i64: 512, 147>}, {pipeline_mode = #tpu.pipeline_mode<synchronous>, transform_indices = @transform_1, window_bounds = array<i64: 147, 64>}, {transform_indices = @transform_2, window_bounds = array<i64: 512, 64>}, {transform_indices = @transform_3, window_bounds = array<i64: 1, 1, 64>}, {transform_indices = @transform_4, window_bounds = array<i64: 1, 1, 64>}]} {
    %c0 = arith.constant 0 : index
    %c0_0 = arith.constant 0 : index
    %0 = vector.load %arg1[%c0, %c0_0] : memref<512x147xbf16, #tpu.memory_space<vmem>>, vector<512x147xbf16>
    %c0_1 = arith.constant 0 : index
    %c0_2 = arith.constant 0 : index
    %1 = vector.load %arg2[%c0_1, %c0_2] : memref<147x64xbf16, #tpu.memory_space<vmem>>, vector<147x64xbf16>
    %cst = arith.constant dense<0.000000e+00> : vector<512x64xf32>
    %2 = tpu.matmul %0, %1, %cst {dimension_numbers = #tpu.dot_dimension_numbers<[1], [0], [0], [1], [0, 0, 1, 1], [], []>} : vector<512x147xbf16>, vector<147x64xbf16>, vector<512x64xf32> -> vector<512x64xf32>
    %3 = arith.truncf %2 : vector<512x64xf32> to vector<512x64xbf16>
    %c0_3 = arith.constant 0 : index
    %c0_4 = arith.constant 0 : index
    %4 = vector.load %arg3[%c0_3, %c0_4] : memref<512x64xbf16, #tpu.memory_space<vmem>>, vector<512x64xbf16>
    tpu.vector_store %arg3[%c0_3, %c0_4], %3 {strides = array<i32>} : memref<512x64xbf16, #tpu.memory_space<vmem>>, vector<512x64xbf16>,
    %cst_5 = arith.constant dense<0.000000e+00> : vector<64xf32>
    %5 = vector.multi_reduction <add>, %2, %cst_5 [0] : vector<512x64xf32> to vector<64xf32>
    %6 = vector.shape_cast %5 : vector<64xf32> to vector<1x64xf32>
    %c0_6 = arith.constant 0 : index
    %c0_7 = arith.constant 0 : index
    %c0_8 = arith.constant 0 : index
    %7 = vector.load %arg4[%c0_6, %c0_7, %c0_8] : memref<1x1x64xf32, #tpu.memory_space<vmem>>, vector<1x1x64xf32>
    %8 = vector.shape_cast %7 : vector<1x1x64xf32> to vector<1x64xf32>
    %9 = vector.shape_cast %6 : vector<1x64xf32> to vector<1x1x64xf32>
    tpu.vector_store %arg4[%c0_6, %c0_7, %c0_8], %9 {strides = array<i32>} : memref<1x1x64xf32, #tpu.memory_space<vmem>>, vector<1x1x64xf32>,
    %10 = arith.mulf %2, %2 : vector<512x64xf32>
    %cst_9 = arith.constant dense<0.000000e+00> : vector<64xf32>
    %11 = vector.multi_reduction <add>, %10, %cst_9 [0] : vector<512x64xf32> to vector<64xf32>
    %12 = vector.shape_cast %11 : vector<64xf32> to vector<1x64xf32>
    %c0_10 = arith.constant 0 : index
    %c0_11 = arith.constant 0 : index
    %c0_12 = arith.constant 0 : index
    %13 = vector.load %arg5[%c0_10, %c0_11, %c0_12] : memref<1x1x64xf32, #tpu.memory_space<vmem>>, vector<1x1x64xf32>
    %14 = vector.shape_cast %13 : vector<1x1x64xf32> to vector<1x64xf32>
    %15 = vector.shape_cast %12 : vector<1x64xf32> to vector<1x1x64xf32>
    tpu.vector_store %arg5[%c0_10, %c0_11, %c0_12], %15 {strides = array<i32>} : memref<1x1x64xf32, #tpu.memory_space<vmem>>, vector<1x1x64xf32>,
    return
  }
  func.func @transform_0(%arg0: i32) -> (i32, i32) {
    %c0_i32 = arith.constant 0 : i32
    %c0_i32_0 = arith.constant 0 : i32
    return %arg0, %c0_i32 : i32, i32
  }
  func.func @transform_1(%arg0: i32) -> (i32, i32) {
    %c0_i32 = arith.constant 0 : i32
    %c0_i32_0 = arith.constant 0 : i32
    %c0_i32_1 = arith.constant 0 : i32
    return %c0_i32, %c0_i32_0 : i32, i32
  }
  func.func @transform_2(%arg0: i32) -> (i32, i32) {
    %c0_i32 = arith.constant 0 : i32
    %c0_i32_0 = arith.constant 0 : i32
    return %arg0, %c0_i32 : i32, i32
  }
  func.func @transform_3(%arg0: i32) -> (i32, i32, i32) {
    %c0_i32 = arith.constant 0 : i32
    %c0_i32_0 = arith.constant 0 : i32
    %c0_i32_1 = arith.constant 0 : i32
    return %arg0, %c0_i32, %c0_i32_0 : i32, i32, i32
  }
  func.func @transform_4(%arg0: i32) -> (i32, i32, i32) {
    %c0_i32 = arith.constant 0 : i32
    %c0_i32_0 = arith.constant 0 : i32
    %c0_i32_1 = arith.constant 0 : i32
    return %arg0, %c0_i32, %c0_i32_0 : i32, i32, i32
  }
}

</mosaic_0001>

<llo_original>
// kernel: tpu_custom_call.1
$region0: #{tpu_custom_call.1}
  #allocation0 [shape = 'u32[]', space=smem, size = 0x4, offset = 0x4, fixed_abs, tag = 'smem constant byte address 0x4 - core index']
  #allocation1 [shape = 'u32[144,128]{1,0:T(1,128)}', space=vmem, size = 0x12000, scoped, tag = 'internal scratch']
  %s0 = inlined_call_operand.vmem [shape: bf16[512,147], index: 0, kind: input, shape index: {}]
  %s1 = inlined_call_operand.vmem [shape: bf16[147,64], index: 1, kind: input, shape index: {}]
  %s2 = inlined_call_operand.vmem [shape: bf16[512,64], index: 2, kind: output, shape index: {0}]
  %s3 = inlined_call_operand.hbm [shape: f32[1,1,64], index: 3, kind: output, shape index: {1}]
  %s4 = inlined_call_operand.hbm [shape: f32[1,1,64], index: 4, kind: output, shape index: {2}]
  %5 = xla_tuple %s2, %s3, %s4
  %s6 = sld [smem:[#allocation0]]
  $region34: #{tpu_custom_call.1} parent=0
    _
  %s8 = ssub.s32 1, %s6
  %s9 = scalar_select 0, %s8, %s6
  $region1: #{tpu_custom_call.1} parent=0
    #allocation2 [shape = 'u8[512]{0}', space=vmem, size = 0x400, scoped, tag = 'output window, operand 1, single buffered']
    #allocation3 [shape = 's32[1]{0}', space=sflag, size = 0x4, scoped, tag = 'scoped memory for tpu_custom_call.1']
    #allocation4 [shape = 'u8[512]{0}', space=vmem, size = 0x400, scoped, tag = 'output window, operand 2, single buffered']
    #allocation5 [shape = 's32[1]{0}', space=sflag, size = 0x4, scoped, tag = 'scoped memory for tpu_custom_call.1']
    %10 = vsyncpa [#allocation3], 0
    %11 = vsyncpa [#allocation5], 0
    // Predicated region
    $region2: #{tpu_custom_call.1} parent=1 // pred_check
      _
    $region3: #{tpu_custom_call.1} parent=1 // pred_check_branch
      %13 = sbr.rel (0) target = $region5
    $region4: #{tpu_custom_call.1} parent=1 // pred_region
      _
    $region5: #{tpu_custom_call.1} parent=1 // pred_fallthru
      _
    // Predicated region
    $region6: #{tpu_custom_call.1} parent=1 // pred_check
      _
    $region7: #{tpu_custom_call.1} parent=1 // pred_check_branch
      %15 = sbr.rel (0) target = $region9
    $region8: #{tpu_custom_call.1} parent=1 // pred_region
      _
    $region9: #{tpu_custom_call.1} parent=1 // pred_fallthru
      _
    %v17 = vld [vmem:[%s0] sm:$0xff]
    %v18 = vld [vmem:[%s0 + $0x8] sm:$0xff]
    %v19 = vld [vmem:[%s0 + $0x10] sm:$0xff]
    %v20 = vld [vmem:[%s0 + $0x18] sm:$0xff]
    %v21 = vld [vmem:[%s0 + $0x20] sm:$0xff]
    %v22 = vld [vmem:[%s0 + $0x28] sm:$0xff]
    %v23 = vld [vmem:[%s0 + $0x30] sm:$0xff]
    %v24 = vld [vmem:[%s0 + $0x38] sm:$0xff]
    %v25 = vld [vmem:[%s0 + $0x40] sm:$0xff]
    %v26 = vld [vmem:[%s0 + $0x48] sm:$0xff]
    %v27 = vld [vmem:[%s0 + $0x50] sm:$0xff]
    %v28 = vld [vmem:[%s0 + $0x58] sm:$0xff]
    %v29 = vld [vmem:[%s0 + $0x60] sm:$0xff]
    %v30 = vld [vmem:[%s0 + $0x68] sm:$0xff]
    %v31 = vld [vmem:[%s0 + $0x70] sm:$0xff]
    %v32 = vld [vmem:[%s0 + $0x78] sm:$0xff]
    %v33 = vld [vmem:[%s0 + $0x80] sm:$0xff]
    %v34 = vld [vmem:[%s0 + $0x88] sm:$0xff]
    %v35 = vld [vmem:[%s0 + $0x90] sm:$0xff]
    %v36 = vld [vmem:[%s0 + $0x98] sm:$0xff]
    %v37 = vld [vmem:[%s0 + $0xa0] sm:$0xff]
    %v38 = vld [vmem:[%s0 + $0xa8] sm:$0xff]
    %v39 = vld [vmem:[%s0 + $0xb0] sm:$0xff]
    %v40 = vld [vmem:[%s0 + $0xb8] sm:$0xff]
    %v41 = vld [vmem:[%s0 + $0xc0] sm:$0xff]
    %v42 = vld [vmem:[%s0 + $0xc8] sm:$0xff]
    %v43 = vld [vmem:[%s0 + $0xd0] sm:$0xff]
    %v44 = vld [vmem:[%s0 + $0xd8] sm:$0xff]
    %v45 = vld [vmem:[%s0 + $0xe0] sm:$0xff]
    %v46 = vld [vmem:[%s0 + $0xe8] sm:$0xff]
    %v47 = vld [vmem:[%s0 + $0xf0] sm:$0xff]
    %v48 = vld [vmem:[%s0 + $0xf8] sm:$0xff]
    %v49 = vld [vmem:[%s0 + $0x100] sm:$0xff]
    %v50 = vld [vmem:[%s0 + $0x108] sm:$0xff]
    %v51 = vld [vmem:[%s0 + $0x110] sm:$0xff]
    %v52 = vld [vmem:[%s0 + $0x118] sm:$0xff]
    %v53 = vld [vmem:[%s0 + $0x120] sm:$0xff]
    %v54 = vld [vmem:[%s0 + $0x128] sm:$0xff]
    %v55 = vld [vmem:[%s0 + $0x130] sm:$0xff]
    %v56 = vld [vmem:[%s0 + $0x138] sm:$0xff]
    %v57 = vld [vmem:[%s0 + $0x140] sm:$0xff]
    %v58 = vld [vmem:[%s0 + $0x148] sm:$0xff]
    %v59 = vld [vmem:[%s0 + $0x150] sm:$0xff]
    %v60 = vld [vmem:[%s0 + $0x158] sm:$0xff]
    %v61 = vld [vmem:[%s0 + $0x160] sm:$0xff]
    %v62 = vld [vmem:[%s0 + $0x168] sm:$0xff]
    %v63 = vld [vmem:[%s0 + $0x170] sm:$0xff]
    %v64 = vld [vmem:[%s0 + $0x178] sm:$0xff]
    %v65 = vld [vmem:[%s0 + $0x180] sm:$0xff]
    %v66 = vld [vmem:[%s0 + $0x188] sm:$0xff]
    %v67 = vld [vmem:[%s0 + $0x190] sm:$0xff]
    %v68 = vld [vmem:[%s0 + $0x198] sm:$0xff]
    %v69 = vld [vmem:[%s0 + $0x1a0] sm:$0xff]
    %v70 = vld [vmem:[%s0 + $0x1a8] sm:$0xff]
    %v71 = vld [vmem:[%s0 + $0x1b0] sm:$0xff]
    %v72 = vld [vmem:[%s0 + $0x1b8] sm:$0xff]
    %v73 = vld [vmem:[%s0 + $0x1c0] sm:$0xff]
    %v74 = vld [vmem:[%s0 + $0x1c8] sm:$0xff]
    %v75 = vld [vmem:[%s0 + $0x1d0] sm:$0xff]
    %v76 = vld [vmem:[%s0 + $0x1d8] sm:$0xff]
    %v77 = vld [vmem:[%s0 + $0x1e0] sm:$0xff]
    %v78 = vld [vmem:[%s0 + $0x1e8] sm:$0xff]
    %v79 = vld [vmem:[%s0 + $0x1f0] sm:$0xff]
    %v80 = vld [vmem:[%s0 + $0x1f8] sm:$0xff]
    %v81 = vld [vmem:[%s1] sm:$0xf]
    %v82 = vld [vmem:[%s1 + $0x4] sm:$0xf]
    %v83 = vld [vmem:[%s1 + $0x8] sm:$0xf]
    %v84 = vld [vmem:[%s1 + $0xc] sm:$0xf]
    %v85 = vld [vmem:[%s1 + $0x10] sm:$0xf]
    %v86 = vld [vmem:[%s1 + $0x14] sm:$0xf]
    %v87 = vld [vmem:[%s1 + $0x18] sm:$0xf]
    %v88 = vld [vmem:[%s1 + $0x1c] sm:$0xf]
    %v89 = vld [vmem:[%s1 + $0x20] sm:$0xf]
    %v90 = vld [vmem:[%s1 + $0x24] sm:$0xf]
    %v91 = vld [vmem:[%s1 + $0x28] sm:$0xf]
    %v92 = vld [vmem:[%s1 + $0x2c] sm:$0xf]
    %v93 = vld [vmem:[%s1 + $0x30] sm:$0xf]
    %v94 = vld [vmem:[%s1 + $0x34] sm:$0xf]
    %v95 = vld [vmem:[%s1 + $0x38] sm:$0xf]
    %v96 = vld [vmem:[%s1 + $0x3c] sm:$0xf]
    %v97 = vld [vmem:[%s1 + $0x40] sm:$0xf]
    %v98 = vld [vmem:[%s1 + $0x44] sm:$0xf]
    %v99 = vld [vmem:[%s1 + $0x48] sm:$0x3]
    %v164 = vunpack.c.l.b16 %v17
    %v165 = vunpack.c.h.b16 %v17
    %v166 = vunpack.c.l.b16 %v18
    %v167 = vunpack.c.h.b16 %v18
    %v168 = vunpack.c.l.b16 %v19
    %v169 = vunpack.c.h.b16 %v19
    %v170 = vunpack.c.l.b16 %v20
    %v171 = vunpack.c.h.b16 %v20
    %v172 = vunpack.c.l.b16 %v21
    %v173 = vunpack.c.h.b16 %v21
    %v174 = vunpack.c.l.b16 %v22
    %v175 = vunpack.c.h.b16 %v22
    %v176 = vunpack.c.l.b16 %v23
    %v177 = vunpack.c.h.b16 %v23
    %v178 = vunpack.c.l.b16 %v24
    %v179 = vunpack.c.h.b16 %v24
    %v180 = vunpack.c.l.b16 %v25
    %v181 = vunpack.c.h.b16 %v25
    %v182 = vunpack.c.l.b16 %v26
    %v183 = vunpack.c.h.b16 %v26
    %v184 = vunpack.c.l.b16 %v27
    %v185 = vunpack.c.h.b16 %v27
    %v186 = vunpack.c.l.b16 %v28
    %v187 = vunpack.c.h.b16 %v28
    %v188 = vunpack.c.l.b16 %v29
    %v189 = vunpack.c.h.b16 %v29
    %v190 = vunpack.c.l.b16 %v30
    %v191 = vunpack.c.h.b16 %v30
    %v192 = vunpack.c.l.b16 %v31
    %v193 = vunpack.c.h.b16 %v31
    %v194 = vunpack.c.l.b16 %v32
    %v195 = vunpack.c.h.b16 %v32
    %v196 = vunpack.c.l.b16 %v33
    %v197 = vunpack.c.h.b16 %v33
    %v198 = vunpack.c.l.b16 %v34
    %v199 = vunpack.c.h.b16 %v34
    %v200 = vunpack.c.l.b16 %v35
    %v201 = vunpack.c.h.b16 %v35
    %v202 = vunpack.c.l.b16 %v36
    %v203 = vunpack.c.h.b16 %v36
    %v204 = vunpack.c.l.b16 %v37
    %v205 = vunpack.c.h.b16 %v37
    %v206 = vunpack.c.l.b16 %v38
    %v207 = vunpack.c.h.b16 %v38
    %v208 = vunpack.c.l.b16 %v39
    %v209 = vunpack.c.h.b16 %v39
    %v210 = vunpack.c.l.b16 %v40
    %v211 = vunpack.c.h.b16 %v40
    %v212 = vunpack.c.l.b16 %v41
    %v213 = vunpack.c.h.b16 %v41
    %v214 = vunpack.c.l.b16 %v42
    %v215 = vunpack.c.h.b16 %v42
    %v216 = vunpack.c.l.b16 %v43
    %v217 = vunpack.c.h.b16 %v43
    %v218 = vunpack.c.l.b16 %v44
    %v219 = vunpack.c.h.b16 %v44
    %v220 = vunpack.c.l.b16 %v45
    %v221 = vunpack.c.h.b16 %v45
    %v222 = vunpack.c.l.b16 %v46
    %v223 = vunpack.c.h.b16 %v46
    %v224 = vunpack.c.l.b16 %v47
    %v225 = vunpack.c.h.b16 %v47
    %v226 = vunpack.c.l.b16 %v48
    %v227 = vunpack.c.h.b16 %v48
    %v228 = vunpack.c.l.b16 %v49
    %v229 = vunpack.c.h.b16 %v49
    %v230 = vunpack.c.l.b16 %v50
    %v231 = vunpack.c.h.b16 %v50
    %v232 = vunpack.c.l.b16 %v51
    %v233 = vunpack.c.h.b16 %v51
    %v234 = vunpack.c.l.b16 %v52
    %v235 = vunpack.c.h.b16 %v52
    %v236 = vunpack.c.l.b16 %v53
    %v237 = vunpack.c.h.b16 %v53
    %v238 = vunpack.c.l.b16 %v54
    %v239 = vunpack.c.h.b16 %v54
    %v240 = vunpack.c.l.b16 %v55
    %v241 = vunpack.c.h.b16 %v55
    %v242 = vunpack.c.l.b16 %v56
    %v243 = vunpack.c.h.b16 %v56
    %v244 = vunpack.c.l.b16 %v57
    %v245 = vunpack.c.h.b16 %v57
    %v246 = vunpack.c.l.b16 %v58
    %v247 = vunpack.c.h.b16 %v58
    %v248 = vunpack.c.l.b16 %v59
    %v249 = vunpack.c.h.b16 %v59
    %v250 = vunpack.c.l.b16 %v60
    %v251 = vunpack.c.h.b16 %v60
    %v252 = vunpack.c.l.b16 %v61
    %v253 = vunpack.c.h.b16 %v61
    %v254 = vunpack.c.l.b16 %v62
    %v255 = vunpack.c.h.b16 %v62
    %v256 = vunpack.c.l.b16 %v63
    %v257 = vunpack.c.h.b16 %v63
    %v258 = vunpack.c.l.b16 %v64
    %v259 = vunpack.c.h.b16 %v64
    %v260 = vunpack.c.l.b16 %v65
    %v261 = vunpack.c.h.b16 %v65
    %v262 = vunpack.c.l.b16 %v66
    %v263 = vunpack.c.h.b16 %v66
    %v264 = vunpack.c.l.b16 %v67
    %v265 = vunpack.c.h.b16 %v67
    %v266 = vunpack.c.l.b16 %v68
    %v267 = vunpack.c.h.b16 %v68
    %v268 = vunpack.c.l.b16 %v69
    %v269 = vunpack.c.h.b16 %v69
    %v270 = vunpack.c.l.b16 %v70
    %v271 = vunpack.c.h.b16 %v70
    %v272 = vunpack.c.l.b16 %v71
    %v273 = vunpack.c.h.b16 %v71
    %v274 = vunpack.c.l.b16 %v72
    %v275 = vunpack.c.h.b16 %v72
    %v276 = vunpack.c.l.b16 %v73
    %v277 = vunpack.c.h.b16 %v73
    %v278 = vunpack.c.l.b16 %v74
    %v279 = vunpack.c.h.b16 %v74
    %v280 = vunpack.c.l.b16 %v75
    %v281 = vunpack.c.h.b16 %v75
    %v282 = vunpack.c.l.b16 %v76
    %v283 = vunpack.c.h.b16 %v76
    %v284 = vunpack.c.l.b16 %v77
    %v285 = vunpack.c.h.b16 %v77
    %v286 = vunpack.c.l.b16 %v78
    %v287 = vunpack.c.h.b16 %v78
    %v288 = vunpack.c.l.b16 %v79
    %v289 = vunpack.c.h.b16 %v79
    %v290 = vunpack.c.l.b16 %v80
    %v291 = vunpack.c.h.b16 %v80
    %v292 = vpack.c.b16 %v166, %v164
    %v293 = vpack.c.b16 %v167, %v165
    %v294 = vpack.c.b16 %v170, %v168
    %v295 = vpack.c.b16 %v171, %v169
    %v296 = vpack.c.b16 %v174, %v172
    %v297 = vpack.c.b16 %v175, %v173
    %v298 = vpack.c.b16 %v178, %v176
    %v299 = vpack.c.b16 %v179, %v177
    %v300 = vpack.c.b16 %v182, %v180
    %v301 = vpack.c.b16 %v183, %v181
    %v302 = vpack.c.b16 %v186, %v184
    %v303 = vpack.c.b16 %v187, %v185
    %v304 = vpack.c.b16 %v190, %v188
    %v305 = vpack.c.b16 %v191, %v189
    %v306 = vpack.c.b16 %v194, %v192
    %v307 = vpack.c.b16 %v195, %v193
    %v308 = vpack.c.b16 %v198, %v196
    %v309 = vpack.c.b16 %v199, %v197
    %v310 = vpack.c.b16 %v202, %v200
    %v311 = vpack.c.b16 %v203, %v201
    %v312 = vpack.c.b16 %v206, %v204
    %v313 = vpack.c.b16 %v207, %v205
    %v314 = vpack.c.b16 %v210, %v208
    %v315 = vpack.c.b16 %v211, %v209
    %v316 = vpack.c.b16 %v214, %v212
    %v317 = vpack.c.b16 %v215, %v213
    %v318 = vpack.c.b16 %v218, %v216
    %v319 = vpack.c.b16 %v219, %v217
    %v320 = vpack.c.b16 %v222, %v220
    %v321 = vpack.c.b16 %v223, %v221
    %v322 = vpack.c.b16 %v226, %v224
    %v323 = vpack.c.b16 %v227, %v225
    %v324 = vpack.c.b16 %v230, %v228
    %v325 = vpack.c.b16 %v231, %v229
    %v326 = vpack.c.b16 %v234, %v232
    %v327 = vpack.c.b16 %v235, %v233
    %v328 = vpack.c.b16 %v238, %v236
    %v329 = vpack.c.b16 %v239, %v237
    %v330 = vpack.c.b16 %v242, %v240
    %v331 = vpack.c.b16 %v243, %v241
    %v332 = vpack.c.b16 %v246, %v244
    %v333 = vpack.c.b16 %v247, %v245
    %v334 = vpack.c.b16 %v250, %v248
    %v335 = vpack.c.b16 %v251, %v249
    %v336 = vpack.c.b16 %v254, %v252
    %v337 = vpack.c.b16 %v255, %v253
    %v338 = vpack.c.b16 %v258, %v256
    %v339 = vpack.c.b16 %v259, %v257
    %v340 = vpack.c.b16 %v262, %v260
    %v341 = vpack.c.b16 %v263, %v261
    %v342 = vpack.c.b16 %v266, %v264
    %v343 = vpack.c.b16 %v267, %v265
    %v344 = vpack.c.b16 %v270, %v268
    %v345 = vpack.c.b16 %v271, %v269
    %v346 = vpack.c.b16 %v274, %v272
    %v347 = vpack.c.b16 %v275, %v273
    %v348 = vpack.c.b16 %v278, %v276
    %v349 = vpack.c.b16 %v279, %v277
    %v350 = vpack.c.b16 %v282, %v280
    %v351 = vpack.c.b16 %v283, %v281
    %v352 = vpack.c.b16 %v286, %v284
    %v353 = vpack.c.b16 %v287, %v285
    %v354 = vpack.c.b16 %v290, %v288
    %v355 = vpack.c.b16 %v291, %v289
    %v407 = vunpack.c.l.b16 %v81
    %v408 = vunpack.c.l.b16 %v82
    %v409 = vunpack.c.l.b16 %v83
    %v410 = vunpack.c.l.b16 %v84
    %v411 = vunpack.c.l.b16 %v85
    %v412 = vunpack.c.l.b16 %v86
    %v413 = vunpack.c.l.b16 %v87
    %v414 = vunpack.c.l.b16 %v88
    %v415 = vunpack.c.l.b16 %v89
    %v416 = vunpack.c.l.b16 %v90
    %v417 = vunpack.c.l.b16 %v91
    %v418 = vunpack.c.l.b16 %v92
    %v419 = vunpack.c.l.b16 %v93
    %v420 = vunpack.c.l.b16 %v94
    %v421 = vunpack.c.l.b16 %v95
    %v422 = vunpack.c.l.b16 %v96
    %v423 = vunpack.c.l.b16 %v97
    %v424 = vunpack.c.l.b16 %v98
    %v425 = vunpack.c.l.b16 %v99
    %v426 = vpack.c.b16 %v408, %v407
    %v427 = vpack.c.b16 %v410, %v409
    %v428 = vpack.c.b16 %v412, %v411
    %v429 = vpack.c.b16 %v414, %v413
    %v430 = vpack.c.b16 %v416, %v415
    %v431 = vpack.c.b16 %v418, %v417
    %v432 = vpack.c.b16 %v420, %v419
    %v433 = vpack.c.b16 %v422, %v421
    %v434 = vpack.c.b16 %v424, %v423
    %v435 = vpack.c.b16 %v425, %v425
    %vm445 = vcmask 154624
    %v447 = vsel %vm445, %v293, 0
    %v450 = vsel %vm445, %v295, 0
    %v453 = vsel %vm445, %v297, 0
    %v456 = vsel %vm445, %v299, 0
    %v459 = vsel %vm445, %v301, 0
    %v462 = vsel %vm445, %v303, 0
    %v465 = vsel %vm445, %v305, 0
    %v468 = vsel %vm445, %v307, 0
    %v471 = vsel %vm445, %v309, 0
    %v474 = vsel %vm445, %v311, 0
    %v477 = vsel %vm445, %v313, 0
    %v480 = vsel %vm445, %v315, 0
    %v483 = vsel %vm445, %v317, 0
    %v486 = vsel %vm445, %v319, 0
    %v489 = vsel %vm445, %v321, 0
    %v492 = vsel %vm445, %v323, 0
    %v495 = vsel %vm445, %v325, 0
    %v498 = vsel %vm445, %v327, 0
    %v501 = vsel %vm445, %v329, 0
    %v504 = vsel %vm445, %v331, 0
    %v507 = vsel %vm445, %v333, 0
    %v510 = vsel %vm445, %v335, 0
    %v513 = vsel %vm445, %v337, 0
    %v516 = vsel %vm445, %v339, 0
    %v519 = vsel %vm445, %v341, 0
    %v522 = vsel %vm445, %v343, 0
    %v525 = vsel %vm445, %v345, 0
    %v528 = vsel %vm445, %v347, 0
    %v531 = vsel %vm445, %v349, 0
    %v534 = vsel %vm445, %v351, 0
    %v537 = vsel %vm445, %v353, 0
    %v540 = vsel %vm445, %v355, 0
    %vm542 = vcmask 1040384
    %vm543 = vcmask 1041408
    %v544 = vsel %vm542, 4294967295, 65535
    %v545 = vsel %vm543, %v544, 0
    %v547 = vand.u32 %v435, %v545
    %549 = vmatprep.subr.bf16.mxu0 0
    %550 = vmatpush1.bf16.msra.mxu0 %v433
    %551 = vmatprep.subr.bf16.mxu0 0
    %552 = vmatpush1.bf16.msra.mxu0 %v432
    %553 = vmatprep.subr.bf16.mxu0 0
    %554 = vmatpush1.bf16.msra.mxu0 %v431
    %555 = vmatprep.subr.bf16.mxu0 0
    %556 = vmatpush1.bf16.msra.mxu0 %v430
    %557 = vmatprep.subr.bf16.mxu0 0
    %558 = vmatpush1.bf16.msra.mxu0 %v429
    %559 = vmatprep.subr.bf16.mxu0 0
    %560 = vmatpush1.bf16.msra.mxu0 %v428
    %561 = vmatprep.subr.bf16.mxu0 0
    %562 = vmatpush1.bf16.msra.mxu0 %v427
    %563 = vmatprep.subr.bf16.mxu0 0
    %564 = vmatpush1.bf16.msra.mxu0 %v426
    %565 = vmatprep.subr.bf16.mxu0 0
    %566 = vmatpush2.bf16.msra.mxu0 0
    %567 = vmatprep.subr.bf16.mxu0 0
    %568 = vmatpush2.bf16.msra.mxu0 0
    %569 = vmatprep.subr.bf16.mxu0 0
    %570 = vmatpush2.bf16.msra.mxu0 0
    %571 = vmatprep.subr.bf16.mxu0 0
    %572 = vmatpush2.bf16.msra.mxu0 0
    %573 = vmatprep.subr.bf16.mxu0 0
    %574 = vmatpush2.bf16.msra.mxu0 0
    %575 = vmatprep.subr.bf16.mxu0 0
    %576 = vmatpush2.bf16.msra.mxu0 0
    %577 = vmatprep.subr.bf16.mxu0 0
    %578 = vmatpush2.bf16.msra.mxu0 %v547
    %579 = vmatprep.subr.bf16.mxu0 0
    %580 = vmatpush2.bf16.msra.mxu0 %v434
    %581 = vmatprep.mubr.bf16.mxu0 %v447
    %582 = vmatmul.mubr.bf16.gmra.mxu0 %v292
    %v583 = vpop.f32.mrf.mxu0
    %v584 = vadd.f32 0.0, %v583
    %v585 = vpop.f32.mrf.mxu0
    %v586 = vpop.f32.mrf.mxu0
    %v587 = vadd.f32 0.0, %v586
    %v588 = vpop.f32.mrf.mxu0
    %589 = vmatprep.mubr.bf16.mxu0 %v450
    %590 = vmatmul.mubr.bf16.gmra.mxu0 %v294
    %v591 = vpop.f32.mrf.mxu0
    %v592 = vadd.f32 0.0, %v591
    %v593 = vpop.f32.mrf.mxu0
    %v594 = vpop.f32.mrf.mxu0
    %v595 = vadd.f32 0.0, %v594
    %v596 = vpop.f32.mrf.mxu0
    %597 = vmatprep.mubr.bf16.mxu0 %v453
    %598 = vmatmul.mubr.bf16.gmra.mxu0 %v296
    %v599 = vpop.f32.mrf.mxu0
    %v600 = vadd.f32 0.0, %v599
    %v601 = vpop.f32.mrf.mxu0
    %v602 = vpop.f32.mrf.mxu0
    %v603 = vadd.f32 0.0, %v602
    %v604 = vpop.f32.mrf.mxu0
    %605 = vmatprep.mubr.bf16.mxu0 %v456
    %606 = vmatmul.mubr.bf16.gmra.mxu0 %v298
    %v607 = vpop.f32.mrf.mxu0
    %v608 = vadd.f32 0.0, %v607
    %v609 = vpop.f32.mrf.mxu0
    %v610 = vpop.f32.mrf.mxu0
    %v611 = vadd.f32 0.0, %v610
    %v612 = vpop.f32.mrf.mxu0
    %613 = vmatprep.mubr.bf16.mxu0 %v459
    %614 = vmatmul.mubr.bf16.gmra.mxu0 %v300
    %v615 = vpop.f32.mrf.mxu0
    %v616 = vadd.f32 0.0, %v615
    %v617 = vpop.f32.mrf.mxu0
    %v618 = vpop.f32.mrf.mxu0
    %v619 = vadd.f32 0.0, %v618
    %v620 = vpop.f32.mrf.mxu0
    %621 = vmatprep.mubr.bf16.mxu0 %v462
    %622 = vmatmul.mubr.bf16.gmra.mxu0 %v302
    %v623 = vpop.f32.mrf.mxu0
    %v624 = vadd.f32 0.0, %v623
    %v625 = vpop.f32.mrf.mxu0
    %v626 = vpop.f32.mrf.mxu0
    %v627 = vadd.f32 0.0, %v626
    %v628 = vpop.f32.mrf.mxu0
    %629 = vmatprep.mubr.bf16.mxu0 %v465
    %630 = vmatmul.mubr.bf16.gmra.mxu0 %v304
    %v631 = vpop.f32.mrf.mxu0
    %v632 = vadd.f32 0.0, %v631
    %v633 = vpop.f32.mrf.mxu0
    %v634 = vpop.f32.mrf.mxu0
    %v635 = vadd.f32 0.0, %v634
    %v636 = vpop.f32.mrf.mxu0
    %637 = vmatprep.mubr.bf16.mxu0 %v468
    %638 = vmatmul.mubr.bf16.gmra.mxu0 %v306
    %v639 = vpop.f32.mrf.mxu0
    %v640 = vadd.f32 0.0, %v639
    %v641 = vpop.f32.mrf.mxu0
    %v642 = vpop.f32.mrf.mxu0
    %v643 = vadd.f32 0.0, %v642
    %v644 = vpop.f32.mrf.mxu0
    %645 = vmatprep.mubr.bf16.mxu0 %v471
    %646 = vmatmul.mubr.bf16.gmra.mxu0 %v308
    %v647 = vpop.f32.mrf.mxu0
    %v648 = vadd.f32 0.0, %v647
    %v649 = vpop.f32.mrf.mxu0
    %v650 = vpop.f32.mrf.mxu0
    %v651 = vadd.f32 0.0, %v650
    %v652 = vpop.f32.mrf.mxu0
    %653 = vmatprep.mubr.bf16.mxu0 %v474
    %654 = vmatmul.mubr.bf16.gmra.mxu0 %v310
    %v655 = vpop.f32.mrf.mxu0
    %v656 = vadd.f32 0.0, %v655
    %v657 = vpop.f32.mrf.mxu0
    %v658 = vpop.f32.mrf.mxu0
    %v659 = vadd.f32 0.0, %v658
    %v660 = vpop.f32.mrf.mxu0
    %661 = vmatprep.mubr.bf16.mxu0 %v477
    %662 = vmatmul.mubr.bf16.gmra.mxu0 %v312
    %v663 = vpop.f32.mrf.mxu0
    %v664 = vadd.f32 0.0, %v663
    %v665 = vpop.f32.mrf.mxu0
    %v666 = vpop.f32.mrf.mxu0
    %v667 = vadd.f32 0.0, %v666
    %v668 = vpop.f32.mrf.mxu0
    %669 = vmatprep.mubr.bf16.mxu0 %v480
    %670 = vmatmul.mubr.bf16.gmra.mxu0 %v314
    %v671 = vpop.f32.mrf.mxu0
    %v672 = vadd.f32 0.0, %v671
    %v673 = vpop.f32.mrf.mxu0
    %v674 = vpop.f32.mrf.mxu0
    %v675 = vadd.f32 0.0, %v674
    %v676 = vpop.f32.mrf.mxu0
    %677 = vmatprep.mubr.bf16.mxu0 %v483
    %678 = vmatmul.mubr.bf16.gmra.mxu0 %v316
    %v679 = vpop.f32.mrf.mxu0
    %v680 = vadd.f32 0.0, %v679
    %v681 = vpop.f32.mrf.mxu0
    %v682 = vpop.f32.mrf.mxu0
    %v683 = vadd.f32 0.0, %v682
    %v684 = vpop.f32.mrf.mxu0
    %685 = vmatprep.mubr.bf16.mxu0 %v486
    %686 = vmatmul.mubr.bf16.gmra.mxu0 %v318
    %v687 = vpop.f32.mrf.mxu0
    %v688 = vadd.f32 0.0, %v687
    %v689 = vpop.f32.mrf.mxu0
    %v690 = vpop.f32.mrf.mxu0
    %v691 = vadd.f32 0.0, %v690
    %v692 = vpop.f32.mrf.mxu0
    %693 = vmatprep.mubr.bf16.mxu0 %v489
    %694 = vmatmul.mubr.bf16.gmra.mxu0 %v320
    %v695 = vpop.f32.mrf.mxu0
    %v696 = vadd.f32 0.0, %v695
    %v697 = vpop.f32.mrf.mxu0
    %v698 = vpop.f32.mrf.mxu0
    %v699 = vadd.f32 0.0, %v698
    %v700 = vpop.f32.mrf.mxu0
    %701 = vmatprep.mubr.bf16.mxu0 %v492
    %702 = vmatmul.mubr.bf16.gmra.mxu0 %v322
    %v703 = vpop.f32.mrf.mxu0
    %v704 = vadd.f32 0.0, %v703
    %v705 = vpop.f32.mrf.mxu0
    %v706 = vpop.f32.mrf.mxu0
    %v707 = vadd.f32 0.0, %v706
    %v708 = vpop.f32.mrf.mxu0
    %709 = vmatprep.mubr.bf16.mxu0 %v495
    %710 = vmatmul.mubr.bf16.gmra.mxu0 %v324
    %v711 = vpop.f32.mrf.mxu0
    %v712 = vadd.f32 0.0, %v711
    %v713 = vpop.f32.mrf.mxu0
    %v714 = vpop.f32.mrf.mxu0
    %v715 = vadd.f32 0.0, %v714
    %v716 = vpop.f32.mrf.mxu0
    %717 = vmatprep.mubr.bf16.mxu0 %v498
    %718 = vmatmul.mubr.bf16.gmra.mxu0 %v326
    %v719 = vpop.f32.mrf.mxu0
    %v720 = vadd.f32 0.0, %v719
    %v721 = vpop.f32.mrf.mxu0
    %v722 = vpop.f32.mrf.mxu0
    %v723 = vadd.f32 0.0, %v722
    %v724 = vpop.f32.mrf.mxu0
    %725 = vmatprep.mubr.bf16.mxu0 %v501
    %726 = vmatmul.mubr.bf16.gmra.mxu0 %v328
    %v727 = vpop.f32.mrf.mxu0
    %v728 = vadd.f32 0.0, %v727
    %v729 = vpop.f32.mrf.mxu0
    %v730 = vpop.f32.mrf.mxu0
    %v731 = vadd.f32 0.0, %v730
    %v732 = vpop.f32.mrf.mxu0
    %733 = vmatprep.mubr.bf16.mxu0 %v504
    %734 = vmatmul.mubr.bf16.gmra.mxu0 %v330
    %v735 = vpop.f32.mrf.mxu0
    %v736 = vadd.f32 0.0, %v735
    %v737 = vpop.f32.mrf.mxu0
    %v738 = vpop.f32.mrf.mxu0
    %v739 = vadd.f32 0.0, %v738
    %v740 = vpop.f32.mrf.mxu0
    %741 = vmatprep.mubr.bf16.mxu0 %v507
    %742 = vmatmul.mubr.bf16.gmra.mxu0 %v332
    %v743 = vpop.f32.mrf.mxu0
    %v744 = vadd.f32 0.0, %v743
    %v745 = vpop.f32.mrf.mxu0
    %v746 = vpop.f32.mrf.mxu0
    %v747 = vadd.f32 0.0, %v746
    %v748 = vpop.f32.mrf.mxu0
    %749 = vmatprep.mubr.bf16.mxu0 %v510
    %750 = vmatmul.mubr.bf16.gmra.mxu0 %v334
    %v751 = vpop.f32.mrf.mxu0
    %v752 = vadd.f32 0.0, %v751
    %v753 = vpop.f32.mrf.mxu0
    %v754 = vpop.f32.mrf.mxu0
    %v755 = vadd.f32 0.0, %v754
    %v756 = vpop.f32.mrf.mxu0
    %757 = vmatprep.mubr.bf16.mxu0 %v513
    %758 = vmatmul.mubr.bf16.gmra.mxu0 %v336
    %v759 = vpop.f32.mrf.mxu0
    %v760 = vadd.f32 0.0, %v759
    %v761 = vpop.f32.mrf.mxu0
    %v762 = vpop.f32.mrf.mxu0
    %v763 = vadd.f32 0.0, %v762
    %v764 = vpop.f32.mrf.mxu0
    %765 = vmatprep.mubr.bf16.mxu0 %v516
    %766 = vmatmul.mubr.bf16.gmra.mxu0 %v338
    %v767 = vpop.f32.mrf.mxu0
    %v768 = vadd.f32 0.0, %v767
    %v769 = vpop.f32.mrf.mxu0
    %v770 = vpop.f32.mrf.mxu0
    %v771 = vadd.f32 0.0, %v770
    %v772 = vpop.f32.mrf.mxu0
    %773 = vmatprep.mubr.bf16.mxu0 %v519
    %774 = vmatmul.mubr.bf16.gmra.mxu0 %v340
    %v775 = vpop.f32.mrf.mxu0
    %v776 = vadd.f32 0.0, %v775
    %v777 = vpop.f32.mrf.mxu0
    %v778 = vpop.f32.mrf.mxu0
    %v779 = vadd.f32 0.0, %v778
    %v780 = vpop.f32.mrf.mxu0
    %781 = vmatprep.mubr.bf16.mxu0 %v522
    %782 = vmatmul.mubr.bf16.gmra.mxu0 %v342
    %v783 = vpop.f32.mrf.mxu0
    %v784 = vadd.f32 0.0, %v783
    %v785 = vpop.f32.mrf.mxu0
    %v786 = vpop.f32.mrf.mxu0
    %v787 = vadd.f32 0.0, %v786
    %v788 = vpop.f32.mrf.mxu0
    %789 = vmatprep.mubr.bf16.mxu0 %v525
    %790 = vmatmul.mubr.bf16.gmra.mxu0 %v344
    %v791 = vpop.f32.mrf.mxu0
    %v792 = vadd.f32 0.0, %v791
    %v793 = vpop.f32.mrf.mxu0
    %v794 = vpop.f32.mrf.mxu0
    %v795 = vadd.f32 0.0, %v794
    %v796 = vpop.f32.mrf.mxu0
    %797 = vmatprep.mubr.bf16.mxu0 %v528
    %798 = vmatmul.mubr.bf16.gmra.mxu0 %v346
    %v799 = vpop.f32.mrf.mxu0
    %v800 = vadd.f32 0.0, %v799
    %v801 = vpop.f32.mrf.mxu0
    %v802 = vpop.f32.mrf.mxu0
    %v803 = vadd.f32 0.0, %v802
    %v804 = vpop.f32.mrf.mxu0
    %805 = vmatprep.mubr.bf16.mxu0 %v531
    %806 = vmatmul.mubr.bf16.gmra.mxu0 %v348
    %v807 = vpop.f32.mrf.mxu0
    %v808 = vadd.f32 0.0, %v807
    %v809 = vpop.f32.mrf.mxu0
    %v810 = vpop.f32.mrf.mxu0
    %v811 = vadd.f32 0.0, %v810
    %v812 = vpop.f32.mrf.mxu0
    %813 = vmatprep.mubr.bf16.mxu0 %v534
    %814 = vmatmul.mubr.bf16.gmra.mxu0 %v350
    %v815 = vpop.f32.mrf.mxu0
    %v816 = vadd.f32 0.0, %v815
    %v817 = vpop.f32.mrf.mxu0
    %v818 = vpop.f32.mrf.mxu0
    %v819 = vadd.f32 0.0, %v818
    %v820 = vpop.f32.mrf.mxu0
    %821 = vmatprep.mubr.bf16.mxu0 %v537
    %822 = vmatmul.mubr.bf16.gmra.mxu0 %v352
    %v823 = vpop.f32.mrf.mxu0
    %v824 = vadd.f32 0.0, %v823
    %v825 = vpop.f32.mrf.mxu0
    %v826 = vpop.f32.mrf.mxu0
    %v827 = vadd.f32 0.0, %v826
    %v828 = vpop.f32.mrf.mxu0
    %829 = vmatprep.mubr.bf16.mxu0 %v540
    %830 = vmatmul.mubr.bf16.gmra.mxu0 %v354
    %v831 = vpop.f32.mrf.mxu0
    %v832 = vadd.f32 0.0, %v831
    %v833 = vpop.f32.mrf.mxu0
    %v834 = vpop.f32.mrf.mxu0
    %v835 = vadd.f32 0.0, %v834
    %v836 = vpop.f32.mrf.mxu0
    %837 = vdwg.mxu0
    %v838 = vpack.c.bf16 %v587, %v584
    %v839 = vpack.c.bf16 %v595, %v592
    %v840 = vpack.c.bf16 %v603, %v600
    %v841 = vpack.c.bf16 %v611, %v608
    %v842 = vpack.c.bf16 %v619, %v616
    %v843 = vpack.c.bf16 %v627, %v624
    %v844 = vpack.c.bf16 %v635, %v632
    %v845 = vpack.c.bf16 %v643, %v640
    %v846 = vpack.c.bf16 %v651, %v648
    %v847 = vpack.c.bf16 %v659, %v656
    %v848 = vpack.c.bf16 %v667, %v664
    %v849 = vpack.c.bf16 %v675, %v672
    %v850 = vpack.c.bf16 %v683, %v680
    %v851 = vpack.c.bf16 %v691, %v688
    %v852 = vpack.c.bf16 %v699, %v696
    %v853 = vpack.c.bf16 %v707, %v704
    %v854 = vpack.c.bf16 %v715, %v712
    %v855 = vpack.c.bf16 %v723, %v720
    %v856 = vpack.c.bf16 %v731, %v728
    %v857 = vpack.c.bf16 %v739, %v736
    %v858 = vpack.c.bf16 %v747, %v744
    %v859 = vpack.c.bf16 %v755, %v752
    %v860 = vpack.c.bf16 %v763, %v760
    %v861 = vpack.c.bf16 %v771, %v768
    %v862 = vpack.c.bf16 %v779, %v776
    %v863 = vpack.c.bf16 %v787, %v784
    %v864 = vpack.c.bf16 %v795, %v792
    %v865 = vpack.c.bf16 %v803, %v800
    %v866 = vpack.c.bf16 %v811, %v808
    %v867 = vpack.c.bf16 %v819, %v816
    %v868 = vpack.c.bf16 %v827, %v824
    %v869 = vpack.c.bf16 %v835, %v832
    %v902 = vunpack.c.l.b16 %v838
    %v903 = vunpack.c.h.b16 %v838
    %v904 = vunpack.c.l.b16 %v839
    %v905 = vunpack.c.h.b16 %v839
    %v906 = vunpack.c.l.b16 %v840
    %v907 = vunpack.c.h.b16 %v840
    %v908 = vunpack.c.l.b16 %v841
    %v909 = vunpack.c.h.b16 %v841
    %v910 = vunpack.c.l.b16 %v842
    %v911 = vunpack.c.h.b16 %v842
    %v912 = vunpack.c.l.b16 %v843
    %v913 = vunpack.c.h.b16 %v843
    %v914 = vunpack.c.l.b16 %v844
    %v915 = vunpack.c.h.b16 %v844
    %v916 = vunpack.c.l.b16 %v845
    %v917 = vunpack.c.h.b16 %v845
    %v918 = vunpack.c.l.b16 %v846
    %v919 = vunpack.c.h.b16 %v846
    %v920 = vunpack.c.l.b16 %v847
    %v921 = vunpack.c.h.b16 %v847
    %v922 = vunpack.c.l.b16 %v848
    %v923 = vunpack.c.h.b16 %v848
    %v924 = vunpack.c.l.b16 %v849
    %v925 = vunpack.c.h.b16 %v849
    %v926 = vunpack.c.l.b16 %v850
    %v927 = vunpack.c.h.b16 %v850
    %v928 = vunpack.c.l.b16 %v851
    %v929 = vunpack.c.h.b16 %v851
    %v930 = vunpack.c.l.b16 %v852
    %v931 = vunpack.c.h.b16 %v852
    %v932 = vunpack.c.l.b16 %v853
    %v933 = vunpack.c.h.b16 %v853
    %v934 = vunpack.c.l.b16 %v854
    %v935 = vunpack.c.h.b16 %v854
    %v936 = vunpack.c.l.b16 %v855
    %v937 = vunpack.c.h.b16 %v855
    %v938 = vunpack.c.l.b16 %v856
    %v939 = vunpack.c.h.b16 %v856
    %v940 = vunpack.c.l.b16 %v857
    %v941 = vunpack.c.h.b16 %v857
    %v942 = vunpack.c.l.b16 %v858
    %v943 = vunpack.c.h.b16 %v858
    %v944 = vunpack.c.l.b16 %v859
    %v945 = vunpack.c.h.b16 %v859
    %v946 = vunpack.c.l.b16 %v860
    %v947 = vunpack.c.h.b16 %v860
    %v948 = vunpack.c.l.b16 %v861
    %v949 = vunpack.c.h.b16 %v861
    %v950 = vunpack.c.l.b16 %v862
    %v951 = vunpack.c.h.b16 %v862
    %v952 = vunpack.c.l.b16 %v863
    %v953 = vunpack.c.h.b16 %v863
    %v954 = vunpack.c.l.b16 %v864
    %v955 = vunpack.c.h.b16 %v864
    %v956 = vunpack.c.l.b16 %v865
    %v957 = vunpack.c.h.b16 %v865
    %v958 = vunpack.c.l.b16 %v866
    %v959 = vunpack.c.h.b16 %v866
    %v960 = vunpack.c.l.b16 %v867
    %v961 = vunpack.c.h.b16 %v867
    %v962 = vunpack.c.l.b16 %v868
    %v963 = vunpack.c.h.b16 %v868
    %v964 = vunpack.c.l.b16 %v869
    %v965 = vunpack.c.h.b16 %v869
    %v966 = vpack.c.b16 %v902, %v902
    %v967 = vpack.c.b16 %v903, %v903
    %v968 = vpack.c.b16 %v904, %v904
    %v969 = vpack.c.b16 %v905, %v905
    %v970 = vpack.c.b16 %v906, %v906
    %v971 = vpack.c.b16 %v907, %v907
    %v972 = vpack.c.b16 %v908, %v908
    %v973 = vpack.c.b16 %v909, %v909
    %v974 = vpack.c.b16 %v910, %v910
    %v975 = vpack.c.b16 %v911, %v911
    %v976 = vpack.c.b16 %v912, %v912
    %v977 = vpack.c.b16 %v913, %v913
    %v978 = vpack.c.b16 %v914, %v914
    %v979 = vpack.c.b16 %v915, %v915
    %v980 = vpack.c.b16 %v916, %v916
    %v981 = vpack.c.b16 %v917, %v917
    %v982 = vpack.c.b16 %v918, %v918
    %v983 = vpack.c.b16 %v919, %v919
    %v984 = vpack.c.b16 %v920, %v920
    %v985 = vpack.c.b16 %v921, %v921
    %v986 = vpack.c.b16 %v922, %v922
    %v987 = vpack.c.b16 %v923, %v923
    %v988 = vpack.c.b16 %v924, %v924
    %v989 = vpack.c.b16 %v925, %v925
    %v990 = vpack.c.b16 %v926, %v926
    %v991 = vpack.c.b16 %v927, %v927
    %v992 = vpack.c.b16 %v928, %v928
    %v993 = vpack.c.b16 %v929, %v929
    %v994 = vpack.c.b16 %v930, %v930
    %v995 = vpack.c.b16 %v931, %v931
    %v996 = vpack.c.b16 %v932, %v932
    %v997 = vpack.c.b16 %v933, %v933
    %v998 = vpack.c.b16 %v934, %v934
    %v999 = vpack.c.b16 %v935, %v935
    %v1000 = vpack.c.b16 %v936, %v936
    %v1001 = vpack.c.b16 %v937, %v937
    %v1002 = vpack.c.b16 %v938, %v938
    %v1003 = vpack.c.b16 %v939, %v939
    %v1004 = vpack.c.b16 %v940, %v940
    %v1005 = vpack.c.b16 %v941, %v941
    %v1006 = vpack.c.b16 %v942, %v942
    %v1007 = vpack.c.b16 %v943, %v943
    %v1008 = vpack.c.b16 %v944, %v944
    %v1009 = vpack.c.b16 %v945, %v945
    %v1010 = vpack.c.b16 %v946, %v946
    %v1011 = vpack.c.b16 %v947, %v947
    %v1012 = vpack.c.b16 %v948, %v948
    %v1013 = vpack.c.b16 %v949, %v949
    %v1014 = vpack.c.b16 %v950, %v950
    %v1015 = vpack.c.b16 %v951, %v951
    %v1016 = vpack.c.b16 %v952, %v952
    %v1017 = vpack.c.b16 %v953, %v953
    %v1018 = vpack.c.b16 %v954, %v954
    %v1019 = vpack.c.b16 %v955, %v955
    %v1020 = vpack.c.b16 %v956, %v956
    %v1021 = vpack.c.b16 %v957, %v957
    %v1022 = vpack.c.b16 %v958, %v958
    %v1023 = vpack.c.b16 %v959, %v959
    %v1024 = vpack.c.b16 %v960, %v960
    %v1025 = vpack.c.b16 %v961, %v961
    %v1026 = vpack.c.b16 %v962, %v962
    %v1027 = vpack.c.b16 %v963, %v963
    %v1028 = vpack.c.b16 %v964, %v964
    %v1029 = vpack.c.b16 %v965, %v965
    %vm1094 = vcmask 519168
    %1095 = vst.msk [vmem:[%s2] sm:$0xf] %vm1094, %v966
    %1096 = vst.msk [vmem:[%s2 + $0x4] sm:$0xf] %vm1094, %v967
    %1097 = vst.msk [vmem:[%s2 + $0x8] sm:$0xf] %vm1094, %v968
    %1098 = vst.msk [vmem:[%s2 + $0xc] sm:$0xf] %vm1094, %v969
    %1099 = vst.msk [vmem:[%s2 + $0x10] sm:$0xf] %vm1094, %v970
    %1100 = vst.msk [vmem:[%s2 + $0x14] sm:$0xf] %vm1094, %v971
    %1101 = vst.msk [vmem:[%s2 + $0x18] sm:$0xf] %vm1094, %v972
    %1102 = vst.msk [vmem:[%s2 + $0x1c] sm:$0xf] %vm1094, %v973
    %1103 = vst.msk [vmem:[%s2 + $0x20] sm:$0xf] %vm1094, %v974
    %1104 = vst.msk [vmem:[%s2 + $0x24] sm:$0xf] %vm1094, %v975
    %1105 = vst.msk [vmem:[%s2 + $0x28] sm:$0xf] %vm1094, %v976
    %1106 = vst.msk [vmem:[%s2 + $0x2c] sm:$0xf] %vm1094, %v977
    %1107 = vst.msk [vmem:[%s2 + $0x30] sm:$0xf] %vm1094, %v978
    %1108 = vst.msk [vmem:[%s2 + $0x34] sm:$0xf] %vm1094, %v979
    %1109 = vst.msk [vmem:[%s2 + $0x38] sm:$0xf] %vm1094, %v980
    %1110 = vst.msk [vmem:[%s2 + $0x3c] sm:$0xf] %vm1094, %v981
    %1111 = vst.msk [vmem:[%s2 + $0x40] sm:$0xf] %vm1094, %v982
    %1112 = vst.msk [vmem:[%s2 + $0x44] sm:$0xf] %vm1094, %v983
    %1113 = vst.msk [vmem:[%s2 + $0x48] sm:$0xf] %vm1094, %v984
    %1114 = vst.msk [vmem:[%s2 + $0x4c] sm:$0xf] %vm1094, %v985
    %1115 = vst.msk [vmem:[%s2 + $0x50] sm:$0xf] %vm1094, %v986
    %1116 = vst.msk [vmem:[%s2 + $0x54] sm:$0xf] %vm1094, %v987
    %1117 = vst.msk [vmem:[%s2 + $0x58] sm:$0xf] %vm1094, %v988
    %1118 = vst.msk [vmem:[%s2 + $0x5c] sm:$0xf] %vm1094, %v989
    %1119 = vst.msk [vmem:[%s2 + $0x60] sm:$0xf] %vm1094, %v990
    %1120 = vst.msk [vmem:[%s2 + $0x64] sm:$0xf] %vm1094, %v991
    %1121 = vst.msk [vmem:[%s2 + $0x68] sm:$0xf] %vm1094, %v992
    %1122 = vst.msk [vmem:[%s2 + $0x6c] sm:$0xf] %vm1094, %v993
    %1123 = vst.msk [vmem:[%s2 + $0x70] sm:$0xf] %vm1094, %v994
    %1124 = vst.msk [vmem:[%s2 + $0x74] sm:$0xf] %vm1094, %v995
    %1125 = vst.msk [vmem:[%s2 + $0x78] sm:$0xf] %vm1094, %v996
    %1126 = vst.msk [vmem:[%s2 + $0x7c] sm:$0xf] %vm1094, %v997
    %1127 = vst.msk [vmem:[%s2 + $0x80] sm:$0xf] %vm1094, %v998
    %1128 = vst.msk [vmem:[%s2 + $0x84] sm:$0xf] %vm1094, %v999
    %1129 = vst.msk [vmem:[%s2 + $0x88] sm:$0xf] %vm1094, %v1000
    %1130 = vst.msk [vmem:[%s2 + $0x8c] sm:$0xf] %vm1094, %v1001
    %1131 = vst.msk [vmem:[%s2 + $0x90] sm:$0xf] %vm1094, %v1002
    %1132 = vst.msk [vmem:[%s2 + $0x94] sm:$0xf] %vm1094, %v1003
    %1133 = vst.msk [vmem:[%s2 + $0x98] sm:$0xf] %vm1094, %v1004
    %1134 = vst.msk [vmem:[%s2 + $0x9c] sm:$0xf] %vm1094, %v1005
    %1135 = vst.msk [vmem:[%s2 + $0xa0] sm:$0xf] %vm1094, %v1006
    %1136 = vst.msk [vmem:[%s2 + $0xa4] sm:$0xf] %vm1094, %v1007
    %1137 = vst.msk [vmem:[%s2 + $0xa8] sm:$0xf] %vm1094, %v1008
    %1138 = vst.msk [vmem:[%s2 + $0xac] sm:$0xf] %vm1094, %v1009
    %1139 = vst.msk [vmem:[%s2 + $0xb0] sm:$0xf] %vm1094, %v1010
    %1140 = vst.msk [vmem:[%s2 + $0xb4] sm:$0xf] %vm1094, %v1011
    %1141 = vst.msk [vmem:[%s2 + $0xb8] sm:$0xf] %vm1094, %v1012
    %1142 = vst.msk [vmem:[%s2 + $0xbc] sm:$0xf] %vm1094, %v1013
    %1143 = vst.msk [vmem:[%s2 + $0xc0] sm:$0xf] %vm1094, %v1014
    %1144 = vst.msk [vmem:[%s2 + $0xc4] sm:$0xf] %vm1094, %v1015
    %1145 = vst.msk [vmem:[%s2 + $0xc8] sm:$0xf] %vm1094, %v1016
    %1146 = vst.msk [vmem:[%s2 + $0xcc] sm:$0xf] %vm1094, %v1017
    %1147 = vst.msk [vmem:[%s2 + $0xd0] sm:$0xf] %vm1094, %v1018
    %1148 = vst.msk [vmem:[%s2 + $0xd4] sm:$0xf] %vm1094, %v1019
    %1149 = vst.msk [vmem:[%s2 + $0xd8] sm:$0xf] %vm1094, %v1020
    %1150 = vst.msk [vmem:[%s2 + $0xdc] sm:$0xf] %vm1094, %v1021
    %1151 = vst.msk [vmem:[%s2 + $0xe0] sm:$0xf] %vm1094, %v1022
    %1152 = vst.msk [vmem:[%s2 + $0xe4] sm:$0xf] %vm1094, %v1023
    %1153 = vst.msk [vmem:[%s2 + $0xe8] sm:$0xf] %vm1094, %v1024
    %1154 = vst.msk [vmem:[%s2 + $0xec] sm:$0xf] %vm1094, %v1025
    %1155 = vst.msk [vmem:[%s2 + $0xf0] sm:$0xf] %vm1094, %v1026
    %1156 = vst.msk [vmem:[%s2 + $0xf4] sm:$0xf] %vm1094, %v1027
    %1157 = vst.msk [vmem:[%s2 + $0xf8] sm:$0xf] %vm1094, %v1028
    %1158 = vst.msk [vmem:[%s2 + $0xfc] sm:$0xf] %vm1094, %v1029
    %vm1159 = vcmask 523264
    %v1160 = vsel %vm1159, %v584, 0.0
    %v1161 = vsel %vm1159, %v587, 0.0
    %v1162 = vadd.f32 %v1160, %v1161
    %v1163 = vsel %vm1159, %v592, 0.0
    %v1164 = vadd.f32 %v1162, %v1163
    %v1165 = vsel %vm1159, %v595, 0.0
    %v1166 = vadd.f32 %v1164, %v1165
    %v1167 = vsel %vm1159, %v600, 0.0
    %v1168 = vadd.f32 %v1166, %v1167
    %v1169 = vsel %vm1159, %v603, 0.0
    %v1170 = vadd.f32 %v1168, %v1169
    %v1171 = vsel %vm1159, %v608, 0.0
    %v1172 = vadd.f32 %v1170, %v1171
    %v1173 = vsel %vm1159, %v611, 0.0
    %v1174 = vadd.f32 %v1172, %v1173
    %v1175 = vsel %vm1159, %v616, 0.0
    %v1176 = vadd.f32 %v1174, %v1175
    %v1177 = vsel %vm1159, %v619, 0.0
    %v1178 = vadd.f32 %v1176, %v1177
    %v1179 = vsel %vm1159, %v624, 0.0
    %v1180 = vadd.f32 %v1178, %v1179
    %v1181 = vsel %vm1159, %v627, 0.0
    %v1182 = vadd.f32 %v1180, %v1181
    %v1183 = vsel %vm1159, %v632, 0.0
    %v1184 = vadd.f32 %v1182, %v1183
    %v1185 = vsel %vm1159, %v635, 0.0
    %v1186 = vadd.f32 %v1184, %v1185
    %v1187 = vsel %vm1159, %v640, 0.0
    %v1188 = vadd.f32 %v1186, %v1187
    %v1189 = vsel %vm1159, %v643, 0.0
    %v1190 = vadd.f32 %v1188, %v1189
    %v1191 = vsel %vm1159, %v648, 0.0
    %v1192 = vadd.f32 %v1190, %v1191
    %v1193 = vsel %vm1159, %v651, 0.0
    %v1194 = vadd.f32 %v1192, %v1193
    %v1195 = vsel %vm1159, %v656, 0.0
    %v1196 = vadd.f32 %v1194, %v1195
    %v1197 = vsel %vm1159, %v659, 0.0
    %v1198 = vadd.f32 %v1196, %v1197
    %v1199 = vsel %vm1159, %v664, 0.0
    %v1200 = vadd.f32 %v1198, %v1199
    %v1201 = vsel %vm1159, %v667, 0.0
    %v1202 = vadd.f32 %v1200, %v1201
    %v1203 = vsel %vm1159, %v672, 0.0
    %v1204 = vadd.f32 %v1202, %v1203
    %v1205 = vsel %vm1159, %v675, 0.0
    %v1206 = vadd.f32 %v1204, %v1205
    %v1207 = vsel %vm1159, %v680, 0.0
    %v1208 = vadd.f32 %v1206, %v1207
    %v1209 = vsel %vm1159, %v683, 0.0
    %v1210 = vadd.f32 %v1208, %v1209
    %v1211 = vsel %vm1159, %v688, 0.0
    %v1212 = vadd.f32 %v1210, %v1211
    %v1213 = vsel %vm1159, %v691, 0.0
    %v1214 = vadd.f32 %v1212, %v1213
    %v1215 = vsel %vm1159, %v696, 0.0
    %v1216 = vadd.f32 %v1214, %v1215
    %v1217 = vsel %vm1159, %v699, 0.0
    %v1218 = vadd.f32 %v1216, %v1217
    %v1219 = vsel %vm1159, %v704, 0.0
    %v1220 = vadd.f32 %v1218, %v1219
    %v1221 = vsel %vm1159, %v707, 0.0
    %v1222 = vadd.f32 %v1220, %v1221
    %v1223 = vsel %vm1159, %v712, 0.0
    %v1224 = vadd.f32 %v1222, %v1223
    %v1225 = vsel %vm1159, %v715, 0.0
    %v1226 = vadd.f32 %v1224, %v1225
    %v1227 = vsel %vm1159, %v720, 0.0
    %v1228 = vadd.f32 %v1226, %v1227
    %v1229 = vsel %vm1159, %v723, 0.0
    %v1230 = vadd.f32 %v1228, %v1229
    %v1231 = vsel %vm1159, %v728, 0.0
    %v1232 = vadd.f32 %v1230, %v1231
    %v1233 = vsel %vm1159, %v731, 0.0
    %v1234 = vadd.f32 %v1232, %v1233
    %v1235 = vsel %vm1159, %v736, 0.0
    %v1236 = vadd.f32 %v1234, %v1235
    %v1237 = vsel %vm1159, %v739, 0.0
    %v1238 = vadd.f32 %v1236, %v1237
    %v1239 = vsel %vm1159, %v744, 0.0
    %v1240 = vadd.f32 %v1238, %v1239
    %v1241 = vsel %vm1159, %v747, 0.0
    %v1242 = vadd.f32 %v1240, %v1241
    %v1243 = vsel %vm1159, %v752, 0.0
    %v1244 = vadd.f32 %v1242, %v1243
    %v1245 = vsel %vm1159, %v755, 0.0
    %v1246 = vadd.f32 %v1244, %v1245
    %v1247 = vsel %vm1159, %v760, 0.0
    %v1248 = vadd.f32 %v1246, %v1247
    %v1249 = vsel %vm1159, %v763, 0.0
    %v1250 = vadd.f32 %v1248, %v1249
    %v1251 = vsel %vm1159, %v768, 0.0
    %v1252 = vadd.f32 %v1250, %v1251
    %v1253 = vsel %vm1159, %v771, 0.0
    %v1254 = vadd.f32 %v1252, %v1253
    %v1255 = vsel %vm1159, %v776, 0.0
    %v1256 = vadd.f32 %v1254, %v1255
    %v1257 = vsel %vm1159, %v779, 0.0
    %v1258 = vadd.f32 %v1256, %v1257
    %v1259 = vsel %vm1159, %v784, 0.0
    %v1260 = vadd.f32 %v1258, %v1259
    %v1261 = vsel %vm1159, %v787, 0.0
    %v1262 = vadd.f32 %v1260, %v1261
    %v1263 = vsel %vm1159, %v792, 0.0
    %v1264 = vadd.f32 %v1262, %v1263
    %v1265 = vsel %vm1159, %v795, 0.0
    %v1266 = vadd.f32 %v1264, %v1265
    %v1267 = vsel %vm1159, %v800, 0.0
    %v1268 = vadd.f32 %v1266, %v1267
    %v1269 = vsel %vm1159, %v803, 0.0
    %v1270 = vadd.f32 %v1268, %v1269
    %v1271 = vsel %vm1159, %v808, 0.0
    %v1272 = vadd.f32 %v1270, %v1271
    %v1273 = vsel %vm1159, %v811, 0.0
    %v1274 = vadd.f32 %v1272, %v1273
    %v1275 = vsel %vm1159, %v816, 0.0
    %v1276 = vadd.f32 %v1274, %v1275
    %v1277 = vsel %vm1159, %v819, 0.0
    %v1278 = vadd.f32 %v1276, %v1277
    %v1279 = vsel %vm1159, %v824, 0.0
    %v1280 = vadd.f32 %v1278, %v1279
    %v1281 = vsel %vm1159, %v827, 0.0
    %v1282 = vadd.f32 %v1280, %v1281
    %v1283 = vsel %vm1159, %v832, 0.0
    %v1284 = vadd.f32 %v1282, %v1283
    %v1285 = vsel %vm1159, %v835, 0.0
    %v1286 = vadd.f32 %v1284, %v1285
    %v1287 = vrot.slane %v1286, 4
    %v1288 = vadd.f32 %v1286, %v1287
    %v1289 = vrot.slane %v1288, 2
    %v1290 = vadd.f32 %v1288, %v1289
    %v1291 = vrot.slane %v1290, 1
    %v1292 = vadd.f32 %v1290, %v1291
    %vm1293 = vcmask 516096
    %1294 = vst.msk [vmem:[#allocation2] sm:$0x1] %vm1293, %v1292
    %v1295 = vmul.f32 %v584, %v584
    %v1296 = vmul.f32 %v587, %v587
    %v1297 = vmul.f32 %v592, %v592
    %v1298 = vmul.f32 %v595, %v595
    %v1299 = vmul.f32 %v600, %v600
    %v1300 = vmul.f32 %v603, %v603
    %v1301 = vmul.f32 %v608, %v608
    %v1302 = vmul.f32 %v611, %v611
    %v1303 = vmul.f32 %v616, %v616
    %v1304 = vmul.f32 %v619, %v619
    %v1305 = vmul.f32 %v624, %v624
    %v1306 = vmul.f32 %v627, %v627
    %v1307 = vmul.f32 %v632, %v632
    %v1308 = vmul.f32 %v635, %v635
    %v1309 = vmul.f32 %v640, %v640
    %v1310 = vmul.f32 %v643, %v643
    %v1311 = vmul.f32 %v648, %v648
    %v1312 = vmul.f32 %v651, %v651
    %v1313 = vmul.f32 %v656, %v656
    %v1314 = vmul.f32 %v659, %v659
    %v1315 = vmul.f32 %v664, %v664
    %v1316 = vmul.f32 %v667, %v667
    %v1317 = vmul.f32 %v672, %v672
    %v1318 = vmul.f32 %v675, %v675
    %v1319 = vmul.f32 %v680, %v680
    %v1320 = vmul.f32 %v683, %v683
    %v1321 = vmul.f32 %v688, %v688
    %v1322 = vmul.f32 %v691, %v691
    %v1323 = vmul.f32 %v696, %v696
    %v1324 = vmul.f32 %v699, %v699
    %v1325 = vmul.f32 %v704, %v704
    %v1326 = vmul.f32 %v707, %v707
    %v1327 = vmul.f32 %v712, %v712
    %v1328 = vmul.f32 %v715, %v715
    %v1329 = vmul.f32 %v720, %v720
    %v1330 = vmul.f32 %v723, %v723
    %v1331 = vmul.f32 %v728, %v728
    %v1332 = vmul.f32 %v731, %v731
    %v1333 = vmul.f32 %v736, %v736
    %v1334 = vmul.f32 %v739, %v739
    %v1335 = vmul.f32 %v744, %v744
    %v1336 = vmul.f32 %v747, %v747
    %v1337 = vmul.f32 %v752, %v752
    %v1338 = vmul.f32 %v755, %v755
    %v1339 = vmul.f32 %v760, %v760
    %v1340 = vmul.f32 %v763, %v763
    %v1341 = vmul.f32 %v768, %v768
    %v1342 = vmul.f32 %v771, %v771
    %v1343 = vmul.f32 %v776, %v776
    %v1344 = vmul.f32 %v779, %v779
    %v1345 = vmul.f32 %v784, %v784
    %v1346 = vmul.f32 %v787, %v787
    %v1347 = vmul.f32 %v792, %v792
    %v1348 = vmul.f32 %v795, %v795
    %v1349 = vmul.f32 %v800, %v800
    %v1350 = vmul.f32 %v803, %v803
    %v1351 = vmul.f32 %v808, %v808
    %v1352 = vmul.f32 %v811, %v811
    %v1353 = vmul.f32 %v816, %v816
    %v1354 = vmul.f32 %v819, %v819
    %v1355 = vmul.f32 %v824, %v824
    %v1356 = vmul.f32 %v827, %v827
    %v1357 = vmul.f32 %v832, %v832
    %v1358 = vmul.f32 %v835, %v835
    %v1359 = vsel %vm1159, %v1295, 0.0
    %v1360 = vsel %vm1159, %v1296, 0.0
    %v1361 = vadd.f32 %v1359, %v1360
    %v1362 = vsel %vm1159, %v1297, 0.0
    %v1363 = vadd.f32 %v1361, %v1362
    %v1364 = vsel %vm1159, %v1298, 0.0
    %v1365 = vadd.f32 %v1363, %v1364
    %v1366 = vsel %vm1159, %v1299, 0.0
    %v1367 = vadd.f32 %v1365, %v1366
    %v1368 = vsel %vm1159, %v1300, 0.0
    %v1369 = vadd.f32 %v1367, %v1368
    %v1370 = vsel %vm1159, %v1301, 0.0
    %v1371 = vadd.f32 %v1369, %v1370
    %v1372 = vsel %vm1159, %v1302, 0.0
    %v1373 = vadd.f32 %v1371, %v1372
    %v1374 = vsel %vm1159, %v1303, 0.0
    %v1375 = vadd.f32 %v1373, %v1374
    %v1376 = vsel %vm1159, %v1304, 0.0
    %v1377 = vadd.f32 %v1375, %v1376
    %v1378 = vsel %vm1159, %v1305, 0.0
    %v1379 = vadd.f32 %v1377, %v1378
    %v1380 = vsel %vm1159, %v1306, 0.0
    %v1381 = vadd.f32 %v1379, %v1380
    %v1382 = vsel %vm1159, %v1307, 0.0
    %v1383 = vadd.f32 %v1381, %v1382
    %v1384 = vsel %vm1159, %v1308, 0.0
    %v1385 = vadd.f32 %v1383, %v1384
    %v1386 = vsel %vm1159, %v1309, 0.0
    %v1387 = vadd.f32 %v1385, %v1386
    %v1388 = vsel %vm1159, %v1310, 0.0
    %v1389 = vadd.f32 %v1387, %v1388
    %v1390 = vsel %vm1159, %v1311, 0.0
    %v1391 = vadd.f32 %v1389, %v1390
    %v1392 = vsel %vm1159, %v1312, 0.0
    %v1393 = vadd.f32 %v1391, %v1392
    %v1394 = vsel %vm1159, %v1313, 0.0
    %v1395 = vadd.f32 %v1393, %v1394
    %v1396 = vsel %vm1159, %v1314, 0.0
    %v1397 = vadd.f32 %v1395, %v1396
    %v1398 = vsel %vm1159, %v1315, 0.0
    %v1399 = vadd.f32 %v1397, %v1398
    %v1400 = vsel %vm1159, %v1316, 0.0
    %v1401 = vadd.f32 %v1399, %v1400
    %v1402 = vsel %vm1159, %v1317, 0.0
    %v1403 = vadd.f32 %v1401, %v1402
    %v1404 = vsel %vm1159, %v1318, 0.0
    %v1405 = vadd.f32 %v1403, %v1404
    %v1406 = vsel %vm1159, %v1319, 0.0
    %v1407 = vadd.f32 %v1405, %v1406
    %v1408 = vsel %vm1159, %v1320, 0.0
    %v1409 = vadd.f32 %v1407, %v1408
    %v1410 = vsel %vm1159, %v1321, 0.0
    %v1411 = vadd.f32 %v1409, %v1410
    %v1412 = vsel %vm1159, %v1322, 0.0
    %v1413 = vadd.f32 %v1411, %v1412
    %v1414 = vsel %vm1159, %v1323, 0.0
    %v1415 = vadd.f32 %v1413, %v1414
    %v1416 = vsel %vm1159, %v1324, 0.0
    %v1417 = vadd.f32 %v1415, %v1416
    %v1418 = vsel %vm1159, %v1325, 0.0
    %v1419 = vadd.f32 %v1417, %v1418
    %v1420 = vsel %vm1159, %v1326, 0.0
    %v1421 = vadd.f32 %v1419, %v1420
    %v1422 = vsel %vm1159, %v1327, 0.0
    %v1423 = vadd.f32 %v1421, %v1422
    %v1424 = vsel %vm1159, %v1328, 0.0
    %v1425 = vadd.f32 %v1423, %v1424
    %v1426 = vsel %vm1159, %v1329, 0.0
    %v1427 = vadd.f32 %v1425, %v1426
    %v1428 = vsel %vm1159, %v1330, 0.0
    %v1429 = vadd.f32 %v1427, %v1428
    %v1430 = vsel %vm1159, %v1331, 0.0
    %v1431 = vadd.f32 %v1429, %v1430
    %v1432 = vsel %vm1159, %v1332, 0.0
    %v1433 = vadd.f32 %v1431, %v1432
    %v1434 = vsel %vm1159, %v1333, 0.0
    %v1435 = vadd.f32 %v1433, %v1434
    %v1436 = vsel %vm1159, %v1334, 0.0
    %v1437 = vadd.f32 %v1435, %v1436
    %v1438 = vsel %vm1159, %v1335, 0.0
    %v1439 = vadd.f32 %v1437, %v1438
    %v1440 = vsel %vm1159, %v1336, 0.0
    %v1441 = vadd.f32 %v1439, %v1440
    %v1442 = vsel %vm1159, %v1337, 0.0
    %v1443 = vadd.f32 %v1441, %v1442
    %v1444 = vsel %vm1159, %v1338, 0.0
    %v1445 = vadd.f32 %v1443, %v1444
    %v1446 = vsel %vm1159, %v1339, 0.0
    %v1447 = vadd.f32 %v1445, %v1446
    %v1448 = vsel %vm1159, %v1340, 0.0
    %v1449 = vadd.f32 %v1447, %v1448
    %v1450 = vsel %vm1159, %v1341, 0.0
    %v1451 = vadd.f32 %v1449, %v1450
    %v1452 = vsel %vm1159, %v1342, 0.0
    %v1453 = vadd.f32 %v1451, %v1452
    %v1454 = vsel %vm1159, %v1343, 0.0
    %v1455 = vadd.f32 %v1453, %v1454
    %v1456 = vsel %vm1159, %v1344, 0.0
    %v1457 = vadd.f32 %v1455, %v1456
    %v1458 = vsel %vm1159, %v1345, 0.0
    %v1459 = vadd.f32 %v1457, %v1458
    %v1460 = vsel %vm1159, %v1346, 0.0
    %v1461 = vadd.f32 %v1459, %v1460
    %v1462 = vsel %vm1159, %v1347, 0.0
    %v1463 = vadd.f32 %v1461, %v1462
    %v1464 = vsel %vm1159, %v1348, 0.0
    %v1465 = vadd.f32 %v1463, %v1464
    %v1466 = vsel %vm1159, %v1349, 0.0
    %v1467 = vadd.f32 %v1465, %v1466
    %v1468 = vsel %vm1159, %v1350, 0.0
    %v1469 = vadd.f32 %v1467, %v1468
    %v1470 = vsel %vm1159, %v1351, 0.0
    %v1471 = vadd.f32 %v1469, %v1470
    %v1472 = vsel %vm1159, %v1352, 0.0
    %v1473 = vadd.f32 %v1471, %v1472
    %v1474 = vsel %vm1159, %v1353, 0.0
    %v1475 = vadd.f32 %v1473, %v1474
    %v1476 = vsel %vm1159, %v1354, 0.0
    %v1477 = vadd.f32 %v1475, %v1476
    %v1478 = vsel %vm1159, %v1355, 0.0
    %v1479 = vadd.f32 %v1477, %v1478
    %v1480 = vsel %vm1159, %v1356, 0.0
    %v1481 = vadd.f32 %v1479, %v1480
    %v1482 = vsel %vm1159, %v1357, 0.0
    %v1483 = vadd.f32 %v1481, %v1482
    %v1484 = vsel %vm1159, %v1358, 0.0
    %v1485 = vadd.f32 %v1483, %v1484
    %v1486 = vrot.slane %v1485, 4
    %v1487 = vadd.f32 %v1485, %v1486
    %v1488 = vrot.slane %v1487, 2
    %v1489 = vadd.f32 %v1487, %v1488
    %v1490 = vrot.slane %v1489, 1
    %v1491 = vadd.f32 %v1489, %v1490
    %1492 = vst.msk [vmem:[#allocation4] sm:$0x1] %vm1293, %v1491
    // Predicated region
    $region10: #{tpu_custom_call.1} parent=1 // pred_check
      _
    $region11: #{tpu_custom_call.1} parent=1 // pred_check_branch
      %1494 = sbr.rel (0) target = $region13
    $region12: #{tpu_custom_call.1} parent=1 // pred_region
      _
    $region13: #{tpu_custom_call.1} parent=1 // pred_fallthru
      _
    // Predicated region
    $region14: #{tpu_custom_call.1} parent=1 // pred_check
      _
    $region15: #{tpu_custom_call.1} parent=1 // pred_check_branch
      %1496 = sbr.rel (0) target = $region17
    $region16: #{tpu_custom_call.1} parent=1 // pred_region
      %s1498 = ssub.s32 16, 16
      %1499 = vsyncadd [#allocation3], %s1498
      %s1501 = sshll.u32 [#allocation2], 4
      %s1502 = int_to_ptr.vmem [resolvable:$true] %s1501
      %1504 = dma.vmem_to_hbm [thread:$0]  %s1502, 16, %s3, [#allocation3]
    $region17: #{tpu_custom_call.1} parent=1 // pred_fallthru
      _
    // Predicated region
    $region18: #{tpu_custom_call.1} parent=1 // pred_check
      _
    $region19: #{tpu_custom_call.1} parent=1 // pred_check_branch
      %1506 = sbr.rel (0) target = $region21
    $region20: #{tpu_custom_call.1} parent=1 // pred_region
      %s1508 = ssub.s32 16, 16
      %1509 = vsyncadd [#allocation5], %s1508
      %s1511 = sshll.u32 [#allocation4], 4
      %s1512 = int_to_ptr.vmem [resolvable:$true] %s1511
      %1514 = dma.vmem_to_hbm [thread:$0]  %s1512, 16, %s4, [#allocation5]
    $region21: #{tpu_custom_call.1} parent=1 // pred_fallthru
      _
    // Predicated region
    $region22: #{tpu_custom_call.1} parent=1 // pred_check
      _
    $region23: #{tpu_custom_call.1} parent=1 // pred_check_branch
      %1516 = sbr.rel (0) target = $region25
    $region24: #{tpu_custom_call.1} parent=1 // pred_region
      _
    $region25: #{tpu_custom_call.1} parent=1 // pred_fallthru
      _
    // Predicated region
    $region26: #{tpu_custom_call.1} parent=1 // pred_check
      _
    $region27: #{tpu_custom_call.1} parent=1 // pred_check_branch
      %1518 = sbr.rel (0) target = $region29
    $region28: #{tpu_custom_call.1} parent=1 // pred_region
      %1519 = dma.done [#allocation3], 16
    $region29: #{tpu_custom_call.1} parent=1 // pred_fallthru
      _
    // Predicated region
    $region30: #{tpu_custom_call.1} parent=1 // pred_check
      _
    $region31: #{tpu_custom_call.1} parent=1 // pred_check_branch
      %1521 = sbr.rel (0) target = $region33
    $region32: #{tpu_custom_call.1} parent=1 // pred_region
      %1522 = dma.done [#allocation5], 16
    $region33: #{tpu_custom_call.1} parent=1 // pred_fallthru
      _
    %1523 = vsyncpa [#allocation3], 1
    %1524 = vsyncpa [#allocation5], 1

</llo_original>
